<compile_context>
chip_gen: v5e
topology: v5e:2x2
jax: 0.10.0
libtpu: 0.0.40
codegen_flags: <defaults>
</compile_context>

<pallas_src>
import functools

import jax
import jax.numpy as jnp
from jax import lax
from jax.experimental import pallas as pl
from jax.experimental.pallas import tpu as pltpu


def _round_up(x: int, m: int) -> int:
    return (x + m - 1) // m * m


def _param_layout(n_layers, H, meta_dim, algo_dim, enc_hidden, dec_hidden):
    """Static row/col layout of the single packed parameter slab."""
    act_lanes = _round_up(max(meta_dim, algo_dim), 128)
    widths = [enc_hidden, H, 4 * H, dec_hidden, algo_dim]
    if n_layers >= 2:
        widths.append(8 * H)                # staircase-fused [W_hh_l | W_ih_{l+1}]
    lanes = _round_up(max(widths), 128)

    layout = {}
    row = 0

    def add(name, rows, cols):
        nonlocal row
        layout[name] = (row, rows, cols)
        row += _round_up(rows, 8)           # every block starts sublane-tile aligned

    add("enc_w1", act_lanes, enc_hidden)    # K-padded to the activation lane width
    add("enc_w2", enc_hidden, H)
    add("w_ih0", act_lanes, 4 * H)          # K-padded to the activation lane width
    for l in range(n_layers - 1):
        add(f"stair{l}", H, 8 * H)          # [W_hh_l | W_ih_{l+1}]
    add("w_hh_last", H, 4 * H)
    add("dec_w1", H, dec_hidden)
    add("dec_w2", dec_hidden, algo_dim)

    bias_names = (["enc_b1", "enc_b2", "b0"]
                  + [f"b{l}" for l in range(1, n_layers)]
                  + ["dec_b1", "dec_b2"])
    bias_cols = {"enc_b1": enc_hidden, "enc_b2": H, "b0": 4 * H,
                 "dec_b1": dec_hidden, "dec_b2": algo_dim}
    for l in range(1, n_layers):
        bias_cols[f"b{l}"] = 4 * H
    bias_start = row
    for i, nm in enumerate(bias_names):     # one row each inside a single aligned block
        layout[nm] = (bias_start + i, 1, bias_cols[nm])
    row = bias_start + _round_up(len(bias_names), 8)

    total_rows = _round_up(row, 8)
    return layout, total_rows, lanes, act_lanes


def pack_params(params, *, n_layers, hidden_dim):
    """Packs all weights & (pre-fused) biases into ONE f32 slab (build once, cache)."""
    H = hidden_dim
    meta_dim, enc_hidden = params["enc_w1"].shape
    dec_hidden = params["dec_w1"].shape[1]
    algo_dim = params["lstm"][0]["w_ih"].shape[0]
    layout, rows, lanes, _ = _param_layout(n_layers, H, meta_dim, algo_dim,
                                           enc_hidden, dec_hidden)

    slab = jnp.zeros((rows, lanes), jnp.float32)

    def put(s, name, arr):
        off, _, _ = layout[name]
        arr = jnp.asarray(arr, jnp.float32)
        return s.at[off:off + arr.shape[0], :arr.shape[1]].set(arr)

    slab = put(slab, "enc_w1", params["enc_w1"])
    slab = put(slab, "enc_w2", params["enc_w2"])
    slab = put(slab, "w_ih0", params["lstm"][0]["w_ih"])
    for l in range(n_layers - 1):
        stair = jnp.concatenate(
            [params["lstm"][l]["w_hh"], params["lstm"][l + 1]["w_ih"]], axis=1)
        slab = put(slab, f"stair{l}", stair)
    slab = put(slab, "w_hh_last", params["lstm"][n_layers - 1]["w_hh"])
    slab = put(slab, "dec_w1", params["dec_w1"])
    slab = put(slab, "dec_w2", params["dec_w2"])
    slab = put(slab, "enc_b1", params["enc_b1"])
    slab = put(slab, "enc_b2", params["enc_b2"])
    slab = put(slab, "b0", params["lstm"][0]["b_ih"] + params["lstm"][0]["b_hh"])
    for l in range(1, n_layers):
        slab = put(slab, f"b{l}",
                   params["lstm"][l]["b_ih"] + params["lstm"][l]["b_hh"])
    slab = put(slab, "dec_b1", params["dec_b1"])
    slab = put(slab, "dec_b2", params["dec_b2"])
    return slab


def _make_kernel(n_layers, seq_len, Bp, H, layout):
    """Fused encoder -> staircase LSTM -> decoder kernel for fixed sizes."""
    f32 = jnp.float32
    bf16 = jnp.bfloat16

    def kernel(act_ref, prm_ref, out_ref):
        def w(name):                       # weight block -> bf16 MXU operand (once)
            off, rows, cols = layout[name]
            return prm_ref[off:off + rows, 0:cols].astype(bf16)

        def b(name):                       # bias row, stays f32
            off, _, cols = layout[name]
            return prm_ref[off:off + 1, 0:cols]

        # ---- Encoder MLP: meta_features -> h0 (replicated per LSTM layer) ----
        meta = act_ref[0:Bp, :].astype(bf16)                  # (Bp, act_lanes), zero-padded
        e1 = jnp.maximum(
            jnp.dot(meta, w("enc_w1"), preferred_element_type=f32) + b("enc_b1"), 0.0)
        h0 = jnp.dot(e1.astype(bf16), w("enc_w2"),
                     preferred_element_type=f32) + b("enc_b2")          # (Bp, H)

        # ---- Hoisted layer-0 input projection for ALL time steps (one matmul) ----
        lc = act_ref[Bp:Bp + seq_len * Bp, :].astype(bf16)              # (seq*Bp, act_lanes)
        pre0 = jnp.dot(lc, w("w_ih0"), preferred_element_type=f32) + b("b0")

        # ---- Hoisted lane constants: sigmoid(x) = 0.5*tanh(0.5*x) + 0.5 ----
        lane = lax.broadcasted_iota(jnp.int32, (Bp, 4 * H), 1)
        is_g = (lane >= 2 * H) & (lane < 3 * H)
        gate_scale = jnp.where(is_g, 1.0, 0.5).astype(f32)    # pre- & post-scale
        gate_shift = jnp.where(is_g, 0.0, 0.5).astype(f32)    # post-shift (i,f,o only)

        def cell(gates, c_prev):
            # One EUP tanh over the full [i|f|g|o] vreg, then cheap VALU fix-up.
            t_all = jnp.tanh(gates * gate_scale)
            act = t_all * gate_scale + gate_shift             # [sig, sig, tanh, sig]
            i_g = act[:, 0 * H:1 * H]
            f_g = act[:, 1 * H:2 * H]
            g_g = act[:, 2 * H:3 * H]
            o_g = act[:, 3 * H:4 * H]
            c_new = f_g * c_prev + i_g * g_g
            h_new = o_g * jnp.tanh(c_new)
            return h_new, c_new

        # Weights resident in vregs across the fully unrolled time loop.
        stairs = [w(f"stair{l}") for l in range(n_layers - 1)]   # (H, 8H) each
        w_hh_last = w("w_hh_last")                               # (H, 4H)
        # Fused recurrent biases (l >= 1); broadcast hoisted out of the loop.
        b_rec = [jnp.broadcast_to(b(f"b{l}"), (Bp, 4 * H)) for l in range(1, n_layers)]

        # Prime recurrent terms for t=0: h_{-1} = h0 for every layer, c_{-1} = 0.
        h0b = h0.astype(bf16)
        rec = []
        for l in range(n_layers):
            whh = stairs[l][:, :4 * H] if l < n_layers - 1 else w_hh_last
            r = jnp.dot(h0b, whh, preferred_element_type=f32)
            if l >= 1:
                r = r + b_rec[l - 1]                 # b0 is already folded into pre0
            rec.append(r)

        h = [h0] * n_layers
        c = [jnp.zeros((Bp, H), f32) for _ in range(n_layers)]

        # ---- LSTM: fully unrolled time loop, state carried in vregs ----
        for t in range(seq_len):
            # Layer 0: x-projection hoisted; pre0 slice is sublane-tile aligned.
            h[0], c[0] = cell(pre0[t * Bp:(t + 1) * Bp, :] + rec[0], c[0])
            # Staircase: one K=H, N=8H matmul per layer boundary yields BOTH the
            # layer-l recurrent term for t+1 and the layer-(l+1) input for t.
            for l in range(n_layers - 1):
                stair = jnp.dot(h[l].astype(bf16), stairs[l],
                                preferred_element_type=f32)              # (Bp, 8H)
                rec_l = stair[:, :4 * H]
                if l >= 1:
                    rec_l = rec_l + b_rec[l - 1]
                rec[l] = rec_l
                h[l + 1], c[l + 1] = cell(stair[:, 4 * H:8 * H] + rec[l + 1], c[l + 1])
            if t < seq_len - 1:          # top-layer recurrent term for the next step
                r = jnp.dot(h[n_layers - 1].astype(bf16), w_hh_last,
                            preferred_element_type=f32)
                if n_layers >= 2:
                    r = r + b_rec[n_layers - 2]
                rec[n_layers - 1] = r

        # ---- Decoder MLP on the top layer's last hidden state ----
        d1 = jnp.maximum(
            jnp.dot(h[n_layers - 1].astype(bf16), w("dec_w1"),
                    preferred_element_type=f32) + b("dec_b1"), 0.0)
        out_ref[...] = jnp.dot(d1.astype(bf16), w("dec_w2"),
                               preferred_element_type=f32) + b("dec_b2")

    return kernel


def init_params(key, meta_dim, enc_hidden, hidden_dim, algo_dim, dec_hidden, n_layers):
    """Deterministic synthetic parameters (weights stored as (in, out))."""
    def nxt():
        nonlocal key
        key, sub = jax.random.split(key)
        return sub

    scale = 0.1
    p = {}
    p["enc_w1"] = scale * jax.random.normal(nxt(), (meta_dim, enc_hidden), jnp.float32)
    p["enc_b1"] = scale * jax.random.normal(nxt(), (1, enc_hidden), jnp.float32)
    p["enc_w2"] = scale * jax.random.normal(nxt(), (enc_hidden, hidden_dim), jnp.float32)
    p["enc_b2"] = scale * jax.random.normal(nxt(), (1, hidden_dim), jnp.float32)
    p["lstm"] = []
    for l in range(n_layers):
        in_size = algo_dim if l == 0 else hidden_dim
        p["lstm"].append({
            "w_ih": scale * jax.random.normal(nxt(), (in_size, 4 * hidden_dim), jnp.float32),
            "w_hh": scale * jax.random.normal(nxt(), (hidden_dim, 4 * hidden_dim), jnp.float32),
            "b_ih": scale * jax.random.normal(nxt(), (1, 4 * hidden_dim), jnp.float32),
            "b_hh": scale * jax.random.normal(nxt(), (1, 4 * hidden_dim), jnp.float32),
        })
    p["dec_w1"] = scale * jax.random.normal(nxt(), (hidden_dim, dec_hidden), jnp.float32)
    p["dec_b1"] = scale * jax.random.normal(nxt(), (1, dec_hidden), jnp.float32)
    p["dec_w2"] = scale * jax.random.normal(nxt(), (dec_hidden, algo_dim), jnp.float32)
    p["dec_b2"] = scale * jax.random.normal(nxt(), (1, algo_dim), jnp.float32)
    return p


@functools.partial(jax.jit,
                   static_argnames=("n_layers", "hidden_dim", "enc_hidden", "dec_hidden"))
def masif_wp_forward(meta_features, learning_curves, param_slab, *,
                     n_layers, hidden_dim, enc_hidden, dec_hidden):
    """meta_features: (B, meta_dim); learning_curves: (B, algo_dim, seq) (PyTorch layout)."""
    B, algo_dim, seq = learning_curves.shape
    meta_dim = meta_features.shape[1]
    H = hidden_dim
    Bp = max(8, _round_up(B, 8))        # pad batch to the 8-row f32 sublane tile

    layout, prm_rows, prm_lanes, act_lanes = _param_layout(
        n_layers, H, meta_dim, algo_dim, enc_hidden, dec_hidden)
    assert param_slab.shape == (prm_rows, prm_lanes), (param_slab.shape,
                                                       (prm_rows, prm_lanes))

    # ---- Single packed activation slab: [meta ; time-major learning curves] ----
    meta_pad = jnp.zeros((Bp, act_lanes), jnp.float32)
    meta_pad = meta_pad.at[:B, :meta_dim].set(meta_features.astype(jnp.float32))
    lc_tm = jnp.transpose(learning_curves.astype(jnp.float32), (2, 0, 1))  # (seq, B, algo)
    lc_pad = jnp.zeros((seq, Bp, act_lanes), jnp.float32)
    lc_pad = lc_pad.at[:, :B, :algo_dim].set(lc_tm)
    act_slab = jnp.concatenate([meta_pad, lc_pad.reshape(seq * Bp, act_lanes)], axis=0)

    # Advisory cost estimate (helps XLA schedule around the custom call).
    flops = (2 * Bp * act_lanes * enc_hidden + 2 * Bp * enc_hidden * H
             + 2 * seq * Bp * act_lanes * 4 * H
             + 2 * n_layers * Bp * H * 4 * H
             + seq * ((n_layers - 1) * 2 * Bp * H * 8 * H + 2 * Bp * H * 4 * H)
             + 2 * Bp * H * dec_hidden + 2 * Bp * dec_hidden * algo_dim)
    transcendentals = seq * n_layers * Bp * 5 * H
    bytes_accessed = (int(act_slab.size) + int(param_slab.size) + Bp * algo_dim) * 4

    kernel = _make_kernel(n_layers, seq, Bp, H, layout)
    vmem = pltpu.MemorySpace.VMEM
    out = pl.pallas_call(
        kernel,
        out_shape=jax.ShapeDtypeStruct((Bp, algo_dim), jnp.float32),
        in_specs=[pl.BlockSpec(memory_space=vmem),
                  pl.BlockSpec(memory_space=vmem)],
        out_specs=pl.BlockSpec(memory_space=vmem),
        cost_estimate=pl.CostEstimate(flops=flops,
                                      transcendentals=transcendentals,
                                      bytes_accessed=bytes_accessed),
    )(act_slab, param_slab)
    return out[:B]


def reference_forward(meta, lc, params, n_layers, H):
    """Pure-JAX reference of the PyTorch forward (float32)."""
    lc_tm = jnp.transpose(lc.astype(jnp.float32), (2, 0, 1))   # (seq, B, algo)
    e1 = jax.nn.relu(meta @ params["enc_w1"] + params["enc_b1"])
    h0 = e1 @ params["enc_w2"] + params["enc_b2"]
    h = [h0 for _ in range(n_layers)]
    c = [jnp.zeros_like(h0) for _ in range(n_layers)]
    for t in range(lc_tm.shape[0]):
        x = lc_tm[t]
        for l in range(n_layers):
            p = params["lstm"][l]
            gates = x @ p["w_ih"] + p["b_ih"] + h[l] @ p["w_hh"] + p["b_hh"]
            i = jax.nn.sigmoid(gates[:, 0 * H:1 * H])
            f = jax.nn.sigmoid(gates[:, 1 * H:2 * H])
            g = jnp.tanh(gates[:, 2 * H:3 * H])
            o = jax.nn.sigmoid(gates[:, 3 * H:4 * H])
            c[l] = f * c[l] + i * g
            h[l] = o * jnp.tanh(c[l])
            x = h[l]
    d1 = jax.nn.relu(h[-1] @ params["dec_w1"] + params["dec_b1"])
    return d1 @ params["dec_w2"] + params["dec_b2"]


if __name__ == "__main__":
    # Small shapes consistent with the module's forward.
    B = 2            # batch_dim
    META_DIM = 8     # dataset meta-features dim (encoder input)
    ENC_HIDDEN = 16  # encoder hidden width
    HIDDEN = 32      # h_dim = encoder output = LSTM hidden size
    ALGO_DIM = 4     # input_dim = number of algorithms = decoder output dim
    DEC_HIDDEN = 16  # decoder hidden width
    SEQ = 8          # number of fidelities (LSTM time steps)
    N_LAYERS = 2     # LSTM layers

    key = jax.random.PRNGKey(0)
    k_params, k_meta, k_lc = jax.random.split(key, 3)

    params = init_params(k_params, META_DIM, ENC_HIDDEN, HIDDEN, ALGO_DIM,
                         DEC_HIDDEN, N_LAYERS)
    meta_features = jax.random.normal(k_meta, (B, META_DIM), jnp.float32)
    learning_curves = jax.random.uniform(k_lc, (B, ALGO_DIM, SEQ), jnp.float32)

    # Pack all parameters into a single lane-padded slab ONCE (cached across calls);
    # the kernel then sees exactly two DMA'd inputs (activation slab + param slab).
    param_slab = jax.block_until_ready(
        pack_params(params, n_layers=N_LAYERS, hidden_dim=HIDDEN))

    out = masif_wp_forward(meta_features, learning_curves, param_slab,
                           n_layers=N_LAYERS, hidden_dim=HIDDEN,
                           enc_hidden=ENC_HIDDEN, dec_hidden=DEC_HIDDEN)
    out = jax.block_until_ready(out)

    ref = reference_forward(meta_features, learning_curves, params, N_LAYERS, HIDDEN)
    assert out.shape == (B, ALGO_DIM), out.shape
    assert bool(jnp.all(jnp.isfinite(out)))
    # bf16 MXU operands (per perf review) introduce ~1e-3-level deviation vs the
    # f32 reference; tolerance chosen accordingly.
    assert bool(jnp.allclose(out, ref, rtol=1e-2, atol=1e-2)), (out, ref)
    print("KERNEL_OK")
</pallas_src>

<mosaic_0001>
module attributes {stable_mosaic.version = 11 : i64} {
  func.func @kernel(%arg0: memref<72x128xf32, #tpu.memory_space<vmem>>, %arg1: memref<392x256xf32, #tpu.memory_space<vmem>>, %arg2: memref<8x4xf32, #tpu.memory_space<vmem>>) attributes {dimension_semantics = [], scalar_prefetch = 0 : i64, scratch_operands = 0 : i64, tpu.core_type = #tpu.core_type<tc>} {
    %c0 = arith.constant 0 : index
    %c0_0 = arith.constant 0 : index
    %0 = vector.load %arg0[%c0, %c0_0] : memref<72x128xf32, #tpu.memory_space<vmem>>, vector<8x128xf32>
    %1 = arith.truncf %0 : vector<8x128xf32> to vector<8x128xbf16>
    %c0_1 = arith.constant 0 : index
    %c0_2 = arith.constant 0 : index
    %2 = vector.load %arg1[%c0_1, %c0_2] : memref<392x256xf32, #tpu.memory_space<vmem>>, vector<128x16xf32>
    %3 = arith.truncf %2 : vector<128x16xf32> to vector<128x16xbf16>
    %cst = arith.constant dense<0.000000e+00> : vector<8x16xf32>
    %4 = tpu.matmul %1, %3, %cst {dimension_numbers = #tpu.dot_dimension_numbers<[1], [0], [0], [1], [0, 0, 1, 1], [], []>} : vector<8x128xbf16>, vector<128x16xbf16>, vector<8x16xf32> -> vector<8x16xf32>
    %c384 = arith.constant 384 : index
    %c0_3 = arith.constant 0 : index
    %5 = vector.load %arg1[%c384, %c0_3] : memref<392x256xf32, #tpu.memory_space<vmem>>, vector<1x16xf32>
    %6 = vector.broadcast %5 : vector<1x16xf32> to vector<8x16xf32>
    %7 = arith.addf %4, %6 : vector<8x16xf32>
    %cst_4 = arith.constant 0.000000e+00 : f32
    %8 = vector.broadcast %cst_4 : f32 to vector<8x16xf32>
    %9 = arith.maximumf %7, %8 : vector<8x16xf32>
    %10 = arith.truncf %9 : vector<8x16xf32> to vector<8x16xbf16>
    %c128 = arith.constant 128 : index
    %c0_5 = arith.constant 0 : index
    %11 = vector.load %arg1[%c128, %c0_5] : memref<392x256xf32, #tpu.memory_space<vmem>>, vector<16x32xf32>
    %12 = arith.truncf %11 : vector<16x32xf32> to vector<16x32xbf16>
    %cst_6 = arith.constant dense<0.000000e+00> : vector<8x32xf32>
    %13 = tpu.matmul %10, %12, %cst_6 {dimension_numbers = #tpu.dot_dimension_numbers<[1], [0], [0], [1], [0, 0, 1, 1], [], []>} : vector<8x16xbf16>, vector<16x32xbf16>, vector<8x32xf32> -> vector<8x32xf32>
    %c385 = arith.constant 385 : index
    %c0_7 = arith.constant 0 : index
    %14 = vector.load %arg1[%c385, %c0_7] : memref<392x256xf32, #tpu.memory_space<vmem>>, vector<1x32xf32>
    %15 = vector.broadcast %14 : vector<1x32xf32> to vector<8x32xf32>
    %16 = arith.addf %13, %15 : vector<8x32xf32>
    %c8 = arith.constant 8 : index
    %c0_8 = arith.constant 0 : index
    %17 = vector.load %arg0[%c8, %c0_8] : memref<72x128xf32, #tpu.memory_space<vmem>>, vector<64x128xf32>
    %18 = arith.truncf %17 : vector<64x128xf32> to vector<64x128xbf16>
    %c144 = arith.constant 144 : index
    %c0_9 = arith.constant 0 : index
    %19 = vector.load %arg1[%c144, %c0_9] : memref<392x256xf32, #tpu.memory_space<vmem>>, vector<128x128xf32>
    %20 = arith.truncf %19 : vector<128x128xf32> to vector<128x128xbf16>
    %cst_10 = arith.constant dense<0.000000e+00> : vector<64x128xf32>
    %21 = tpu.matmul %18, %20, %cst_10 {dimension_numbers = #tpu.dot_dimension_numbers<[1], [0], [0], [1], [0, 0, 1, 1], [], []>} : vector<64x128xbf16>, vector<128x128xbf16>, vector<64x128xf32> -> vector<64x128xf32>
    %c386 = arith.constant 386 : index
    %c0_11 = arith.constant 0 : index
    %22 = vector.load %arg1[%c386, %c0_11] : memref<392x256xf32, #tpu.memory_space<vmem>>, vector<1x128xf32>
    %23 = vector.broadcast %22 : vector<1x128xf32> to vector<64x128xf32>
    %24 = arith.addf %21, %23 : vector<64x128xf32>
    %25 = tpu.iota {dimensions = array<i32: 1>} : vector<8x128xi32>
    %c64_i32 = arith.constant 64 : i32
    %26 = vector.broadcast %c64_i32 : i32 to vector<8x128xi32>
    %27 = arith.cmpi sge, %25, %26 : vector<8x128xi32>
    %c96_i32 = arith.constant 96 : i32
    %28 = vector.broadcast %c96_i32 : i32 to vector<8x128xi32>
    %29 = arith.cmpi slt, %25, %28 : vector<8x128xi32>
    %30 = arith.andi %27, %29 : vector<8x128xi1>
    %cst_12 = arith.constant 1.000000e+00 : f32
    %cst_13 = arith.constant 5.000000e-01 : f32
    %31 = vector.broadcast %cst_12 : f32 to vector<8x128xf32>
    %32 = vector.broadcast %cst_13 : f32 to vector<8x128xf32>
    %33 = arith.select %30, %31, %32 : vector<8x128xi1>, vector<8x128xf32>
    %cst_14 = arith.constant 0.000000e+00 : f32
    %cst_15 = arith.constant 5.000000e-01 : f32
    %34 = vector.broadcast %cst_14 : f32 to vector<8x128xf32>
    %35 = vector.broadcast %cst_15 : f32 to vector<8x128xf32>
    %36 = arith.select %30, %34, %35 : vector<8x128xi1>, vector<8x128xf32>
    %c272 = arith.constant 272 : index
    %c0_16 = arith.constant 0 : index
    %37 = vector.load %arg1[%c272, %c0_16] : memref<392x256xf32, #tpu.memory_space<vmem>>, vector<32x256xf32>
    %38 = arith.truncf %37 : vector<32x256xf32> to vector<32x256xbf16>
    %c304 = arith.constant 304 : index
    %c0_17 = arith.constant 0 : index
    %39 = vector.load %arg1[%c304, %c0_17] : memref<392x256xf32, #tpu.memory_space<vmem>>, vector<32x128xf32>
    %40 = arith.truncf %39 : vector<32x128xf32> to vector<32x128xbf16>
    %c387 = arith.constant 387 : index
    %c0_18 = arith.constant 0 : index
    %41 = vector.load %arg1[%c387, %c0_18] : memref<392x256xf32, #tpu.memory_space<vmem>>, vector<1x128xf32>
    %42 = vector.shape_cast %41 : vector<1x128xf32> to vector<1x128xf32>
    %43 = vector.broadcast %42 : vector<1x128xf32> to vector<8x128xf32>
    %44 = arith.truncf %16 : vector<8x32xf32> to vector<8x32xbf16>
    %45 = vector.extract_strided_slice %38 {offsets = [0, 0], sizes = [32, 128], strides = [1, 1]} : vector<32x256xbf16> to vector<32x128xbf16>
    %cst_19 = arith.constant dense<0.000000e+00> : vector<8x128xf32>
    %46 = tpu.matmul %44, %45, %cst_19 {dimension_numbers = #tpu.dot_dimension_numbers<[1], [0], [0], [1], [0, 0, 1, 1], [], []>} : vector<8x32xbf16>, vector<32x128xbf16>, vector<8x128xf32> -> vector<8x128xf32>
    %cst_20 = arith.constant dense<0.000000e+00> : vector<8x128xf32>
    %47 = tpu.matmul %44, %40, %cst_20 {dimension_numbers = #tpu.dot_dimension_numbers<[1], [0], [0], [1], [0, 0, 1, 1], [], []>} : vector<8x32xbf16>, vector<32x128xbf16>, vector<8x128xf32> -> vector<8x128xf32>
    %48 = arith.addf %47, %43 : vector<8x128xf32>
    %cst_21 = arith.constant 0.000000e+00 : f32
    %49 = vector.broadcast %cst_21 : f32 to vector<8x32xf32>
    %cst_22 = arith.constant 0.000000e+00 : f32
    %50 = vector.broadcast %cst_22 : f32 to vector<8x32xf32>
    %51 = vector.extract_strided_slice %24 {offsets = [0, 0], sizes = [8, 128], strides = [1, 1]} : vector<64x128xf32> to vector<8x128xf32>
    %52 = arith.addf %51, %46 : vector<8x128xf32>
    %53 = arith.mulf %52, %33 : vector<8x128xf32>
    %54 = math.tanh %53 : vector<8x128xf32>
    %55 = arith.mulf %54, %33 : vector<8x128xf32>
    %56 = arith.addf %55, %36 : vector<8x128xf32>
    %57 = vector.extract_strided_slice %56 {offsets = [0, 0], sizes = [8, 32], strides = [1, 1]} : vector<8x128xf32> to vector<8x32xf32>
    %58 = vector.extract_strided_slice %56 {offsets = [0, 32], sizes = [8, 32], strides = [1, 1]} : vector<8x128xf32> to vector<8x32xf32>
    %59 = vector.extract_strided_slice %56 {offsets = [0, 64], sizes = [8, 32], strides = [1, 1]} : vector<8x128xf32> to vector<8x32xf32>
    %60 = vector.extract_strided_slice %56 {offsets = [0, 96], sizes = [8, 32], strides = [1, 1]} : vector<8x128xf32> to vector<8x32xf32>
    %61 = arith.mulf %58, %49 : vector<8x32xf32>
    %62 = arith.mulf %57, %59 : vector<8x32xf32>
    %63 = arith.addf %61, %62 : vector<8x32xf32>
    %64 = math.tanh %63 : vector<8x32xf32>
    %65 = arith.mulf %60, %64 : vector<8x32xf32>
    %66 = arith.truncf %65 : vector<8x32xf32> to vector<8x32xbf16>
    %cst_23 = arith.constant dense<0.000000e+00> : vector<8x256xf32>
    %67 = tpu.matmul %66, %38, %cst_23 {dimension_numbers = #tpu.dot_dimension_numbers<[1], [0], [0], [1], [0, 0, 1, 1], [], []>} : vector<8x32xbf16>, vector<32x256xbf16>, vector<8x256xf32> -> vector<8x256xf32>
    %68 = vector.extract_strided_slice %67 {offsets = [0, 0], sizes = [8, 128], strides = [1, 1]} : vector<8x256xf32> to vector<8x128xf32>
    %69 = vector.extract_strided_slice %67 {offsets = [0, 128], sizes = [8, 128], strides = [1, 1]} : vector<8x256xf32> to vector<8x128xf32>
    %70 = arith.addf %69, %48 : vector<8x128xf32>
    %71 = arith.mulf %70, %33 : vector<8x128xf32>
    %72 = math.tanh %71 : vector<8x128xf32>
    %73 = arith.mulf %72, %33 : vector<8x128xf32>
    %74 = arith.addf %73, %36 : vector<8x128xf32>
    %75 = vector.extract_strided_slice %74 {offsets = [0, 0], sizes = [8, 32], strides = [1, 1]} : vector<8x128xf32> to vector<8x32xf32>
    %76 = vector.extract_strided_slice %74 {offsets = [0, 32], sizes = [8, 32], strides = [1, 1]} : vector<8x128xf32> to vector<8x32xf32>
    %77 = vector.extract_strided_slice %74 {offsets = [0, 64], sizes = [8, 32], strides = [1, 1]} : vector<8x128xf32> to vector<8x32xf32>
    %78 = vector.extract_strided_slice %74 {offsets = [0, 96], sizes = [8, 32], strides = [1, 1]} : vector<8x128xf32> to vector<8x32xf32>
    %79 = arith.mulf %76, %50 : vector<8x32xf32>
    %80 = arith.mulf %75, %77 : vector<8x32xf32>
    %81 = arith.addf %79, %80 : vector<8x32xf32>
    %82 = math.tanh %81 : vector<8x32xf32>
    %83 = arith.mulf %78, %82 : vector<8x32xf32>
    %84 = arith.truncf %83 : vector<8x32xf32> to vector<8x32xbf16>
    %cst_24 = arith.constant dense<0.000000e+00> : vector<8x128xf32>
    %85 = tpu.matmul %84, %40, %cst_24 {dimension_numbers = #tpu.dot_dimension_numbers<[1], [0], [0], [1], [0, 0, 1, 1], [], []>} : vector<8x32xbf16>, vector<32x128xbf16>, vector<8x128xf32> -> vector<8x128xf32>
    %86 = arith.addf %85, %43 : vector<8x128xf32>
    %87 = vector.extract_strided_slice %24 {offsets = [8, 0], sizes = [8, 128], strides = [1, 1]} : vector<64x128xf32> to vector<8x128xf32>
    %88 = arith.addf %87, %68 : vector<8x128xf32>
    %89 = arith.mulf %88, %33 : vector<8x128xf32>
    %90 = math.tanh %89 : vector<8x128xf32>
    %91 = arith.mulf %90, %33 : vector<8x128xf32>
    %92 = arith.addf %91, %36 : vector<8x128xf32>
    %93 = vector.extract_strided_slice %92 {offsets = [0, 0], sizes = [8, 32], strides = [1, 1]} : vector<8x128xf32> to vector<8x32xf32>
    %94 = vector.extract_strided_slice %92 {offsets = [0, 32], sizes = [8, 32], strides = [1, 1]} : vector<8x128xf32> to vector<8x32xf32>
    %95 = vector.extract_strided_slice %92 {offsets = [0, 64], sizes = [8, 32], strides = [1, 1]} : vector<8x128xf32> to vector<8x32xf32>
    %96 = vector.extract_strided_slice %92 {offsets = [0, 96], sizes = [8, 32], strides = [1, 1]} : vector<8x128xf32> to vector<8x32xf32>
    %97 = arith.mulf %94, %63 : vector<8x32xf32>
    %98 = arith.mulf %93, %95 : vector<8x32xf32>
    %99 = arith.addf %97, %98 : vector<8x32xf32>
    %100 = math.tanh %99 : vector<8x32xf32>
    %101 = arith.mulf %96, %100 : vector<8x32xf32>
    %102 = arith.truncf %101 : vector<8x32xf32> to vector<8x32xbf16>
    %cst_25 = arith.constant dense<0.000000e+00> : vector<8x256xf32>
    %103 = tpu.matmul %102, %38, %cst_25 {dimension_numbers = #tpu.dot_dimension_numbers<[1], [0], [0], [1], [0, 0, 1, 1], [], []>} : vector<8x32xbf16>, vector<32x256xbf16>, vector<8x256xf32> -> vector<8x256xf32>
    %104 = vector.extract_strided_slice %103 {offsets = [0, 0], sizes = [8, 128], strides = [1, 1]} : vector<8x256xf32> to vector<8x128xf32>
    %105 = vector.extract_strided_slice %103 {offsets = [0, 128], sizes = [8, 128], strides = [1, 1]} : vector<8x256xf32> to vector<8x128xf32>
    %106 = arith.addf %105, %86 : vector<8x128xf32>
    %107 = arith.mulf %106, %33 : vector<8x128xf32>
    %108 = math.tanh %107 : vector<8x128xf32>
    %109 = arith.mulf %108, %33 : vector<8x128xf32>
    %110 = arith.addf %109, %36 : vector<8x128xf32>
    %111 = vector.extract_strided_slice %110 {offsets = [0, 0], sizes = [8, 32], strides = [1, 1]} : vector<8x128xf32> to vector<8x32xf32>
    %112 = vector.extract_strided_slice %110 {offsets = [0, 32], sizes = [8, 32], strides = [1, 1]} : vector<8x128xf32> to vector<8x32xf32>
    %113 = vector.extract_strided_slice %110 {offsets = [0, 64], sizes = [8, 32], strides = [1, 1]} : vector<8x128xf32> to vector<8x32xf32>
    %114 = vector.extract_strided_slice %110 {offsets = [0, 96], sizes = [8, 32], strides = [1, 1]} : vector<8x128xf32> to vector<8x32xf32>
    %115 = arith.mulf %112, %81 : vector<8x32xf32>
    %116 = arith.mulf %111, %113 : vector<8x32xf32>
    %117 = arith.addf %115, %116 : vector<8x32xf32>
    %118 = math.tanh %117 : vector<8x32xf32>
    %119 = arith.mulf %114, %118 : vector<8x32xf32>
    %120 = arith.truncf %119 : vector<8x32xf32> to vector<8x32xbf16>
    %cst_26 = arith.constant dense<0.000000e+00> : vector<8x128xf32>
    %121 = tpu.matmul %120, %40, %cst_26 {dimension_numbers = #tpu.dot_dimension_numbers<[1], [0], [0], [1], [0, 0, 1, 1], [], []>} : vector<8x32xbf16>, vector<32x128xbf16>, vector<8x128xf32> -> vector<8x128xf32>
    %122 = arith.addf %121, %43 : vector<8x128xf32>
    %123 = vector.extract_strided_slice %24 {offsets = [16, 0], sizes = [8, 128], strides = [1, 1]} : vector<64x128xf32> to vector<8x128xf32>
    %124 = arith.addf %123, %104 : vector<8x128xf32>
    %125 = arith.mulf %124, %33 : vector<8x128xf32>
    %126 = math.tanh %125 : vector<8x128xf32>
    %127 = arith.mulf %126, %33 : vector<8x128xf32>
    %128 = arith.addf %127, %36 : vector<8x128xf32>
    %129 = vector.extract_strided_slice %128 {offsets = [0, 0], sizes = [8, 32], strides = [1, 1]} : vector<8x128xf32> to vector<8x32xf32>
    %130 = vector.extract_strided_slice %128 {offsets = [0, 32], sizes = [8, 32], strides = [1, 1]} : vector<8x128xf32> to vector<8x32xf32>
    %131 = vector.extract_strided_slice %128 {offsets = [0, 64], sizes = [8, 32], strides = [1, 1]} : vector<8x128xf32> to vector<8x32xf32>
    %132 = vector.extract_strided_slice %128 {offsets = [0, 96], sizes = [8, 32], strides = [1, 1]} : vector<8x128xf32> to vector<8x32xf32>
    %133 = arith.mulf %130, %99 : vector<8x32xf32>
    %134 = arith.mulf %129, %131 : vector<8x32xf32>
    %135 = arith.addf %133, %134 : vector<8x32xf32>
    %136 = math.tanh %135 : vector<8x32xf32>
    %137 = arith.mulf %132, %136 : vector<8x32xf32>
    %138 = arith.truncf %137 : vector<8x32xf32> to vector<8x32xbf16>
    %cst_27 = arith.constant dense<0.000000e+00> : vector<8x256xf32>
    %139 = tpu.matmul %138, %38, %cst_27 {dimension_numbers = #tpu.dot_dimension_numbers<[1], [0], [0], [1], [0, 0, 1, 1], [], []>} : vector<8x32xbf16>, vector<32x256xbf16>, vector<8x256xf32> -> vector<8x256xf32>
    %140 = vector.extract_strided_slice %139 {offsets = [0, 0], sizes = [8, 128], strides = [1, 1]} : vector<8x256xf32> to vector<8x128xf32>
    %141 = vector.extract_strided_slice %139 {offsets = [0, 128], sizes = [8, 128], strides = [1, 1]} : vector<8x256xf32> to vector<8x128xf32>
    %142 = arith.addf %141, %122 : vector<8x128xf32>
    %143 = arith.mulf %142, %33 : vector<8x128xf32>
    %144 = math.tanh %143 : vector<8x128xf32>
    %145 = arith.mulf %144, %33 : vector<8x128xf32>
    %146 = arith.addf %145, %36 : vector<8x128xf32>
    %147 = vector.extract_strided_slice %146 {offsets = [0, 0], sizes = [8, 32], strides = [1, 1]} : vector<8x128xf32> to vector<8x32xf32>
    %148 = vector.extract_strided_slice %146 {offsets = [0, 32], sizes = [8, 32], strides = [1, 1]} : vector<8x128xf32> to vector<8x32xf32>
    %149 = vector.extract_strided_slice %146 {offsets = [0, 64], sizes = [8, 32], strides = [1, 1]} : vector<8x128xf32> to vector<8x32xf32>
    %150 = vector.extract_strided_slice %146 {offsets = [0, 96], sizes = [8, 32], strides = [1, 1]} : vector<8x128xf32> to vector<8x32xf32>
    %151 = arith.mulf %148, %117 : vector<8x32xf32>
    %152 = arith.mulf %147, %149 : vector<8x32xf32>
    %153 = arith.addf %151, %152 : vector<8x32xf32>
    %154 = math.tanh %153 : vector<8x32xf32>
    %155 = arith.mulf %150, %154 : vector<8x32xf32>
    %156 = arith.truncf %155 : vector<8x32xf32> to vector<8x32xbf16>
    %cst_28 = arith.constant dense<0.000000e+00> : vector<8x128xf32>
    %157 = tpu.matmul %156, %40, %cst_28 {dimension_numbers = #tpu.dot_dimension_numbers<[1], [0], [0], [1], [0, 0, 1, 1], [], []>} : vector<8x32xbf16>, vector<32x128xbf16>, vector<8x128xf32> -> vector<8x128xf32>
    %158 = arith.addf %157, %43 : vector<8x128xf32>
    %159 = vector.extract_strided_slice %24 {offsets = [24, 0], sizes = [8, 128], strides = [1, 1]} : vector<64x128xf32> to vector<8x128xf32>
    %160 = arith.addf %159, %140 : vector<8x128xf32>
    %161 = arith.mulf %160, %33 : vector<8x128xf32>
    %162 = math.tanh %161 : vector<8x128xf32>
    %163 = arith.mulf %162, %33 : vector<8x128xf32>
    %164 = arith.addf %163, %36 : vector<8x128xf32>
    %165 = vector.extract_strided_slice %164 {offsets = [0, 0], sizes = [8, 32], strides = [1, 1]} : vector<8x128xf32> to vector<8x32xf32>
    %166 = vector.extract_strided_slice %164 {offsets = [0, 32], sizes = [8, 32], strides = [1, 1]} : vector<8x128xf32> to vector<8x32xf32>
    %167 = vector.extract_strided_slice %164 {offsets = [0, 64], sizes = [8, 32], strides = [1, 1]} : vector<8x128xf32> to vector<8x32xf32>
    %168 = vector.extract_strided_slice %164 {offsets = [0, 96], sizes = [8, 32], strides = [1, 1]} : vector<8x128xf32> to vector<8x32xf32>
    %169 = arith.mulf %166, %135 : vector<8x32xf32>
    %170 = arith.mulf %165, %167 : vector<8x32xf32>
    %171 = arith.addf %169, %170 : vector<8x32xf32>
    %172 = math.tanh %171 : vector<8x32xf32>
    %173 = arith.mulf %168, %172 : vector<8x32xf32>
    %174 = arith.truncf %173 : vector<8x32xf32> to vector<8x32xbf16>
    %cst_29 = arith.constant dense<0.000000e+00> : vector<8x256xf32>
    %175 = tpu.matmul %174, %38, %cst_29 {dimension_numbers = #tpu.dot_dimension_numbers<[1], [0], [0], [1], [0, 0, 1, 1], [], []>} : vector<8x32xbf16>, vector<32x256xbf16>, vector<8x256xf32> -> vector<8x256xf32>
    %176 = vector.extract_strided_slice %175 {offsets = [0, 0], sizes = [8, 128], strides = [1, 1]} : vector<8x256xf32> to vector<8x128xf32>
    %177 = vector.extract_strided_slice %175 {offsets = [0, 128], sizes = [8, 128], strides = [1, 1]} : vector<8x256xf32> to vector<8x128xf32>
    %178 = arith.addf %177, %158 : vector<8x128xf32>
    %179 = arith.mulf %178, %33 : vector<8x128xf32>
    %180 = math.tanh %179 : vector<8x128xf32>
    %181 = arith.mulf %180, %33 : vector<8x128xf32>
    %182 = arith.addf %181, %36 : vector<8x128xf32>
    %183 = vector.extract_strided_slice %182 {offsets = [0, 0], sizes = [8, 32], strides = [1, 1]} : vector<8x128xf32> to vector<8x32xf32>
    %184 = vector.extract_strided_slice %182 {offsets = [0, 32], sizes = [8, 32], strides = [1, 1]} : vector<8x128xf32> to vector<8x32xf32>
    %185 = vector.extract_strided_slice %182 {offsets = [0, 64], sizes = [8, 32], strides = [1, 1]} : vector<8x128xf32> to vector<8x32xf32>
    %186 = vector.extract_strided_slice %182 {offsets = [0, 96], sizes = [8, 32], strides = [1, 1]} : vector<8x128xf32> to vector<8x32xf32>
    %187 = arith.mulf %184, %153 : vector<8x32xf32>
    %188 = arith.mulf %183, %185 : vector<8x32xf32>
    %189 = arith.addf %187, %188 : vector<8x32xf32>
    %190 = math.tanh %189 : vector<8x32xf32>
    %191 = arith.mulf %186, %190 : vector<8x32xf32>
    %192 = arith.truncf %191 : vector<8x32xf32> to vector<8x32xbf16>
    %cst_30 = arith.constant dense<0.000000e+00> : vector<8x128xf32>
    %193 = tpu.matmul %192, %40, %cst_30 {dimension_numbers = #tpu.dot_dimension_numbers<[1], [0], [0], [1], [0, 0, 1, 1], [], []>} : vector<8x32xbf16>, vector<32x128xbf16>, vector<8x128xf32> -> vector<8x128xf32>
    %194 = arith.addf %193, %43 : vector<8x128xf32>
    %195 = vector.extract_strided_slice %24 {offsets = [32, 0], sizes = [8, 128], strides = [1, 1]} : vector<64x128xf32> to vector<8x128xf32>
    %196 = arith.addf %195, %176 : vector<8x128xf32>
    %197 = arith.mulf %196, %33 : vector<8x128xf32>
    %198 = math.tanh %197 : vector<8x128xf32>
    %199 = arith.mulf %198, %33 : vector<8x128xf32>
    %200 = arith.addf %199, %36 : vector<8x128xf32>
    %201 = vector.extract_strided_slice %200 {offsets = [0, 0], sizes = [8, 32], strides = [1, 1]} : vector<8x128xf32> to vector<8x32xf32>
    %202 = vector.extract_strided_slice %200 {offsets = [0, 32], sizes = [8, 32], strides = [1, 1]} : vector<8x128xf32> to vector<8x32xf32>
    %203 = vector.extract_strided_slice %200 {offsets = [0, 64], sizes = [8, 32], strides = [1, 1]} : vector<8x128xf32> to vector<8x32xf32>
    %204 = vector.extract_strided_slice %200 {offsets = [0, 96], sizes = [8, 32], strides = [1, 1]} : vector<8x128xf32> to vector<8x32xf32>
    %205 = arith.mulf %202, %171 : vector<8x32xf32>
    %206 = arith.mulf %201, %203 : vector<8x32xf32>
    %207 = arith.addf %205, %206 : vector<8x32xf32>
    %208 = math.tanh %207 : vector<8x32xf32>
    %209 = arith.mulf %204, %208 : vector<8x32xf32>
    %210 = arith.truncf %209 : vector<8x32xf32> to vector<8x32xbf16>
    %cst_31 = arith.constant dense<0.000000e+00> : vector<8x256xf32>
    %211 = tpu.matmul %210, %38, %cst_31 {dimension_numbers = #tpu.dot_dimension_numbers<[1], [0], [0], [1], [0, 0, 1, 1], [], []>} : vector<8x32xbf16>, vector<32x256xbf16>, vector<8x256xf32> -> vector<8x256xf32>
    %212 = vector.extract_strided_slice %211 {offsets = [0, 0], sizes = [8, 128], strides = [1, 1]} : vector<8x256xf32> to vector<8x128xf32>
    %213 = vector.extract_strided_slice %211 {offsets = [0, 128], sizes = [8, 128], strides = [1, 1]} : vector<8x256xf32> to vector<8x128xf32>
    %214 = arith.addf %213, %194 : vector<8x128xf32>
    %215 = arith.mulf %214, %33 : vector<8x128xf32>
    %216 = math.tanh %215 : vector<8x128xf32>
    %217 = arith.mulf %216, %33 : vector<8x128xf32>
    %218 = arith.addf %217, %36 : vector<8x128xf32>
    %219 = vector.extract_strided_slice %218 {offsets = [0, 0], sizes = [8, 32], strides = [1, 1]} : vector<8x128xf32> to vector<8x32xf32>
    %220 = vector.extract_strided_slice %218 {offsets = [0, 32], sizes = [8, 32], strides = [1, 1]} : vector<8x128xf32> to vector<8x32xf32>
    %221 = vector.extract_strided_slice %218 {offsets = [0, 64], sizes = [8, 32], strides = [1, 1]} : vector<8x128xf32> to vector<8x32xf32>
    %222 = vector.extract_strided_slice %218 {offsets = [0, 96], sizes = [8, 32], strides = [1, 1]} : vector<8x128xf32> to vector<8x32xf32>
    %223 = arith.mulf %220, %189 : vector<8x32xf32>
    %224 = arith.mulf %219, %221 : vector<8x32xf32>
    %225 = arith.addf %223, %224 : vector<8x32xf32>
    %226 = math.tanh %225 : vector<8x32xf32>
    %227 = arith.mulf %222, %226 : vector<8x32xf32>
    %228 = arith.truncf %227 : vector<8x32xf32> to vector<8x32xbf16>
    %cst_32 = arith.constant dense<0.000000e+00> : vector<8x128xf32>
    %229 = tpu.matmul %228, %40, %cst_32 {dimension_numbers = #tpu.dot_dimension_numbers<[1], [0], [0], [1], [0, 0, 1, 1], [], []>} : vector<8x32xbf16>, vector<32x128xbf16>, vector<8x128xf32> -> vector<8x128xf32>
    %230 = arith.addf %229, %43 : vector<8x128xf32>
    %231 = vector.extract_strided_slice %24 {offsets = [40, 0], sizes = [8, 128], strides = [1, 1]} : vector<64x128xf32> to vector<8x128xf32>
    %232 = arith.addf %231, %212 : vector<8x128xf32>
    %233 = arith.mulf %232, %33 : vector<8x128xf32>
    %234 = math.tanh %233 : vector<8x128xf32>
    %235 = arith.mulf %234, %33 : vector<8x128xf32>
    %236 = arith.addf %235, %36 : vector<8x128xf32>
    %237 = vector.extract_strided_slice %236 {offsets = [0, 0], sizes = [8, 32], strides = [1, 1]} : vector<8x128xf32> to vector<8x32xf32>
    %238 = vector.extract_strided_slice %236 {offsets = [0, 32], sizes = [8, 32], strides = [1, 1]} : vector<8x128xf32> to vector<8x32xf32>
    %239 = vector.extract_strided_slice %236 {offsets = [0, 64], sizes = [8, 32], strides = [1, 1]} : vector<8x128xf32> to vector<8x32xf32>
    %240 = vector.extract_strided_slice %236 {offsets = [0, 96], sizes = [8, 32], strides = [1, 1]} : vector<8x128xf32> to vector<8x32xf32>
    %241 = arith.mulf %238, %207 : vector<8x32xf32>
    %242 = arith.mulf %237, %239 : vector<8x32xf32>
    %243 = arith.addf %241, %242 : vector<8x32xf32>
    %244 = math.tanh %243 : vector<8x32xf32>
    %245 = arith.mulf %240, %244 : vector<8x32xf32>
    %246 = arith.truncf %245 : vector<8x32xf32> to vector<8x32xbf16>
    %cst_33 = arith.constant dense<0.000000e+00> : vector<8x256xf32>
    %247 = tpu.matmul %246, %38, %cst_33 {dimension_numbers = #tpu.dot_dimension_numbers<[1], [0], [0], [1], [0, 0, 1, 1], [], []>} : vector<8x32xbf16>, vector<32x256xbf16>, vector<8x256xf32> -> vector<8x256xf32>
    %248 = vector.extract_strided_slice %247 {offsets = [0, 0], sizes = [8, 128], strides = [1, 1]} : vector<8x256xf32> to vector<8x128xf32>
    %249 = vector.extract_strided_slice %247 {offsets = [0, 128], sizes = [8, 128], strides = [1, 1]} : vector<8x256xf32> to vector<8x128xf32>
    %250 = arith.addf %249, %230 : vector<8x128xf32>
    %251 = arith.mulf %250, %33 : vector<8x128xf32>
    %252 = math.tanh %251 : vector<8x128xf32>
    %253 = arith.mulf %252, %33 : vector<8x128xf32>
    %254 = arith.addf %253, %36 : vector<8x128xf32>
    %255 = vector.extract_strided_slice %254 {offsets = [0, 0], sizes = [8, 32], strides = [1, 1]} : vector<8x128xf32> to vector<8x32xf32>
    %256 = vector.extract_strided_slice %254 {offsets = [0, 32], sizes = [8, 32], strides = [1, 1]} : vector<8x128xf32> to vector<8x32xf32>
    %257 = vector.extract_strided_slice %254 {offsets = [0, 64], sizes = [8, 32], strides = [1, 1]} : vector<8x128xf32> to vector<8x32xf32>
    %258 = vector.extract_strided_slice %254 {offsets = [0, 96], sizes = [8, 32], strides = [1, 1]} : vector<8x128xf32> to vector<8x32xf32>
    %259 = arith.mulf %256, %225 : vector<8x32xf32>
    %260 = arith.mulf %255, %257 : vector<8x32xf32>
    %261 = arith.addf %259, %260 : vector<8x32xf32>
    %262 = math.tanh %261 : vector<8x32xf32>
    %263 = arith.mulf %258, %262 : vector<8x32xf32>
    %264 = arith.truncf %263 : vector<8x32xf32> to vector<8x32xbf16>
    %cst_34 = arith.constant dense<0.000000e+00> : vector<8x128xf32>
    %265 = tpu.matmul %264, %40, %cst_34 {dimension_numbers = #tpu.dot_dimension_numbers<[1], [0], [0], [1], [0, 0, 1, 1], [], []>} : vector<8x32xbf16>, vector<32x128xbf16>, vector<8x128xf32> -> vector<8x128xf32>
    %266 = arith.addf %265, %43 : vector<8x128xf32>
    %267 = vector.extract_strided_slice %24 {offsets = [48, 0], sizes = [8, 128], strides = [1, 1]} : vector<64x128xf32> to vector<8x128xf32>
    %268 = arith.addf %267, %248 : vector<8x128xf32>
    %269 = arith.mulf %268, %33 : vector<8x128xf32>
    %270 = math.tanh %269 : vector<8x128xf32>
    %271 = arith.mulf %270, %33 : vector<8x128xf32>
    %272 = arith.addf %271, %36 : vector<8x128xf32>
    %273 = vector.extract_strided_slice %272 {offsets = [0, 0], sizes = [8, 32], strides = [1, 1]} : vector<8x128xf32> to vector<8x32xf32>
    %274 = vector.extract_strided_slice %272 {offsets = [0, 32], sizes = [8, 32], strides = [1, 1]} : vector<8x128xf32> to vector<8x32xf32>
    %275 = vector.extract_strided_slice %272 {offsets = [0, 64], sizes = [8, 32], strides = [1, 1]} : vector<8x128xf32> to vector<8x32xf32>
    %276 = vector.extract_strided_slice %272 {offsets = [0, 96], sizes = [8, 32], strides = [1, 1]} : vector<8x128xf32> to vector<8x32xf32>
    %277 = arith.mulf %274, %243 : vector<8x32xf32>
    %278 = arith.mulf %273, %275 : vector<8x32xf32>
    %279 = arith.addf %277, %278 : vector<8x32xf32>
    %280 = math.tanh %279 : vector<8x32xf32>
    %281 = arith.mulf %276, %280 : vector<8x32xf32>
    %282 = arith.truncf %281 : vector<8x32xf32> to vector<8x32xbf16>
    %cst_35 = arith.constant dense<0.000000e+00> : vector<8x256xf32>
    %283 = tpu.matmul %282, %38, %cst_35 {dimension_numbers = #tpu.dot_dimension_numbers<[1], [0], [0], [1], [0, 0, 1, 1], [], []>} : vector<8x32xbf16>, vector<32x256xbf16>, vector<8x256xf32> -> vector<8x256xf32>
    %284 = vector.extract_strided_slice %283 {offsets = [0, 0], sizes = [8, 128], strides = [1, 1]} : vector<8x256xf32> to vector<8x128xf32>
    %285 = vector.extract_strided_slice %283 {offsets = [0, 128], sizes = [8, 128], strides = [1, 1]} : vector<8x256xf32> to vector<8x128xf32>
    %286 = arith.addf %285, %266 : vector<8x128xf32>
    %287 = arith.mulf %286, %33 : vector<8x128xf32>
    %288 = math.tanh %287 : vector<8x128xf32>
    %289 = arith.mulf %288, %33 : vector<8x128xf32>
    %290 = arith.addf %289, %36 : vector<8x128xf32>
    %291 = vector.extract_strided_slice %290 {offsets = [0, 0], sizes = [8, 32], strides = [1, 1]} : vector<8x128xf32> to vector<8x32xf32>
    %292 = vector.extract_strided_slice %290 {offsets = [0, 32], sizes = [8, 32], strides = [1, 1]} : vector<8x128xf32> to vector<8x32xf32>
    %293 = vector.extract_strided_slice %290 {offsets = [0, 64], sizes = [8, 32], strides = [1, 1]} : vector<8x128xf32> to vector<8x32xf32>
    %294 = vector.extract_strided_slice %290 {offsets = [0, 96], sizes = [8, 32], strides = [1, 1]} : vector<8x128xf32> to vector<8x32xf32>
    %295 = arith.mulf %292, %261 : vector<8x32xf32>
    %296 = arith.mulf %291, %293 : vector<8x32xf32>
    %297 = arith.addf %295, %296 : vector<8x32xf32>
    %298 = math.tanh %297 : vector<8x32xf32>
    %299 = arith.mulf %294, %298 : vector<8x32xf32>
    %300 = arith.truncf %299 : vector<8x32xf32> to vector<8x32xbf16>
    %cst_36 = arith.constant dense<0.000000e+00> : vector<8x128xf32>
    %301 = tpu.matmul %300, %40, %cst_36 {dimension_numbers = #tpu.dot_dimension_numbers<[1], [0], [0], [1], [0, 0, 1, 1], [], []>} : vector<8x32xbf16>, vector<32x128xbf16>, vector<8x128xf32> -> vector<8x128xf32>
    %302 = arith.addf %301, %43 : vector<8x128xf32>
    %303 = vector.extract_strided_slice %24 {offsets = [56, 0], sizes = [8, 128], strides = [1, 1]} : vector<64x128xf32> to vector<8x128xf32>
    %304 = arith.addf %303, %284 : vector<8x128xf32>
    %305 = arith.mulf %304, %33 : vector<8x128xf32>
    %306 = math.tanh %305 : vector<8x128xf32>
    %307 = arith.mulf %306, %33 : vector<8x128xf32>
    %308 = arith.addf %307, %36 : vector<8x128xf32>
    %309 = vector.extract_strided_slice %308 {offsets = [0, 0], sizes = [8, 32], strides = [1, 1]} : vector<8x128xf32> to vector<8x32xf32>
    %310 = vector.extract_strided_slice %308 {offsets = [0, 32], sizes = [8, 32], strides = [1, 1]} : vector<8x128xf32> to vector<8x32xf32>
    %311 = vector.extract_strided_slice %308 {offsets = [0, 64], sizes = [8, 32], strides = [1, 1]} : vector<8x128xf32> to vector<8x32xf32>
    %312 = vector.extract_strided_slice %308 {offsets = [0, 96], sizes = [8, 32], strides = [1, 1]} : vector<8x128xf32> to vector<8x32xf32>
    %313 = arith.mulf %310, %279 : vector<8x32xf32>
    %314 = arith.mulf %309, %311 : vector<8x32xf32>
    %315 = arith.addf %313, %314 : vector<8x32xf32>
    %316 = math.tanh %315 : vector<8x32xf32>
    %317 = arith.mulf %312, %316 : vector<8x32xf32>
    %318 = arith.truncf %317 : vector<8x32xf32> to vector<8x32xbf16>
    %cst_37 = arith.constant dense<0.000000e+00> : vector<8x256xf32>
    %319 = tpu.matmul %318, %38, %cst_37 {dimension_numbers = #tpu.dot_dimension_numbers<[1], [0], [0], [1], [0, 0, 1, 1], [], []>} : vector<8x32xbf16>, vector<32x256xbf16>, vector<8x256xf32> -> vector<8x256xf32>
    %320 = vector.extract_strided_slice %319 {offsets = [0, 128], sizes = [8, 128], strides = [1, 1]} : vector<8x256xf32> to vector<8x128xf32>
    %321 = arith.addf %320, %302 : vector<8x128xf32>
    %322 = arith.mulf %321, %33 : vector<8x128xf32>
    %323 = math.tanh %322 : vector<8x128xf32>
    %324 = arith.mulf %323, %33 : vector<8x128xf32>
    %325 = arith.addf %324, %36 : vector<8x128xf32>
    %326 = vector.extract_strided_slice %325 {offsets = [0, 0], sizes = [8, 32], strides = [1, 1]} : vector<8x128xf32> to vector<8x32xf32>
    %327 = vector.extract_strided_slice %325 {offsets = [0, 32], sizes = [8, 32], strides = [1, 1]} : vector<8x128xf32> to vector<8x32xf32>
    %328 = vector.extract_strided_slice %325 {offsets = [0, 64], sizes = [8, 32], strides = [1, 1]} : vector<8x128xf32> to vector<8x32xf32>
    %329 = vector.extract_strided_slice %325 {offsets = [0, 96], sizes = [8, 32], strides = [1, 1]} : vector<8x128xf32> to vector<8x32xf32>
    %330 = arith.mulf %327, %297 : vector<8x32xf32>
    %331 = arith.mulf %326, %328 : vector<8x32xf32>
    %332 = arith.addf %330, %331 : vector<8x32xf32>
    %333 = math.tanh %332 : vector<8x32xf32>
    %334 = arith.mulf %329, %333 : vector<8x32xf32>
    %335 = arith.truncf %334 : vector<8x32xf32> to vector<8x32xbf16>
    %c336 = arith.constant 336 : index
    %c0_38 = arith.constant 0 : index
    %336 = vector.load %arg1[%c336, %c0_38] : memref<392x256xf32, #tpu.memory_space<vmem>>, vector<32x16xf32>
    %337 = arith.truncf %336 : vector<32x16xf32> to vector<32x16xbf16>
    %cst_39 = arith.constant dense<0.000000e+00> : vector<8x16xf32>
    %338 = tpu.matmul %335, %337, %cst_39 {dimension_numbers = #tpu.dot_dimension_numbers<[1], [0], [0], [1], [0, 0, 1, 1], [], []>} : vector<8x32xbf16>, vector<32x16xbf16>, vector<8x16xf32> -> vector<8x16xf32>
    %c388 = arith.constant 388 : index
    %c0_40 = arith.constant 0 : index
    %339 = vector.load %arg1[%c388, %c0_40] : memref<392x256xf32, #tpu.memory_space<vmem>>, vector<1x16xf32>
    %340 = vector.broadcast %339 : vector<1x16xf32> to vector<8x16xf32>
    %341 = arith.addf %338, %340 : vector<8x16xf32>
    %cst_41 = arith.constant 0.000000e+00 : f32
    %342 = vector.broadcast %cst_41 : f32 to vector<8x16xf32>
    %343 = arith.maximumf %341, %342 : vector<8x16xf32>
    %344 = arith.truncf %343 : vector<8x16xf32> to vector<8x16xbf16>
    %c368 = arith.constant 368 : index
    %c0_42 = arith.constant 0 : index
    %345 = vector.load %arg1[%c368, %c0_42] : memref<392x256xf32, #tpu.memory_space<vmem>>, vector<16x4xf32>
    %346 = arith.truncf %345 : vector<16x4xf32> to vector<16x4xbf16>
    %cst_43 = arith.constant dense<0.000000e+00> : vector<8x4xf32>
    %347 = tpu.matmul %344, %346, %cst_43 {dimension_numbers = #tpu.dot_dimension_numbers<[1], [0], [0], [1], [0, 0, 1, 1], [], []>} : vector<8x16xbf16>, vector<16x4xbf16>, vector<8x4xf32> -> vector<8x4xf32>
    %c389 = arith.constant 389 : index
    %c0_44 = arith.constant 0 : index
    %348 = vector.load %arg1[%c389, %c0_44] : memref<392x256xf32, #tpu.memory_space<vmem>>, vector<1x4xf32>
    %349 = vector.broadcast %348 : vector<1x4xf32> to vector<8x4xf32>
    %350 = arith.addf %347, %349 : vector<8x4xf32>
    %c0_45 = arith.constant 0 : index
    %c0_46 = arith.constant 0 : index
    %351 = vector.load %arg2[%c0_45, %c0_46] : memref<8x4xf32, #tpu.memory_space<vmem>>, vector<8x4xf32>
    tpu.vector_store %arg2[%c0_45, %c0_46], %350 {strides = array<i32>} : memref<8x4xf32, #tpu.memory_space<vmem>>, vector<8x4xf32>,
    return
  }
}

</mosaic_0001>

<llo_original>
// kernel: masif_wp_forward.1
$region0: #{masif_wp_forward.1}
  #allocation0 [shape = 'u32[]', space=smem, size = 0x4, offset = 0x4, fixed_abs, tag = 'smem constant byte address 0x4 - core index']
  #allocation1 [shape = 'u32[72,128]{1,0:T(1,128)}', space=vmem, size = 0x9000, scoped, tag = 'internal scratch']
  %s0 = inlined_call_operand.vmem [shape: f32[72,128], index: 0, kind: input, shape index: {}]
  %s1 = inlined_call_operand.hbm [shape: f32[392,256], index: 1, kind: input, shape index: {}]
  %s2 = inlined_call_operand.vmem [shape: f32[8,4], index: 2, kind: output, shape index: {}]
  %s3 = sld [smem:[#allocation0]]
  $region22: #{masif_wp_forward.1} parent=0
    _
  %s5 = ssub.s32 1, %s3
  %s6 = scalar_select 0, %s5, %s3
  $region1: #{masif_wp_forward.1} parent=0
    #allocation2 [shape = 'u8[401408]{0}', space=vmem, size = 0x62000, scoped, tag = 'input window, operand 1, single buffered']
    #allocation3 [shape = 's32[1]{0}', space=sflag, size = 0x4, scoped, tag = 'scoped memory for masif_wp_forward.1']
    %7 = vsyncpa [#allocation3], 0
    // Predicated region
    $region2: #{masif_wp_forward.1} parent=1 // pred_check
      _
    $region3: #{masif_wp_forward.1} parent=1 // pred_check_branch
      %9 = sbr.rel (0) target = $region5
    $region4: #{masif_wp_forward.1} parent=1 // pred_region
      _
    $region5: #{masif_wp_forward.1} parent=1 // pred_fallthru
      _
    // Predicated region
    $region6: #{masif_wp_forward.1} parent=1 // pred_check
      _
    $region7: #{masif_wp_forward.1} parent=1 // pred_check_branch
      %11 = sbr.rel (0) target = $region9
    $region8: #{masif_wp_forward.1} parent=1 // pred_region
      %13 = vsyncadd [#allocation3], 0
      %s14 = sshll.u32 %s1, 4
      %s15 = int_to_ptr.hbm [resolvable:$true] %s14
      %s16 = sshll.u32 [#allocation2], 4
      %s17 = int_to_ptr.vmem [resolvable:$true] %s16
      %22 = dma.hbm_to_vmem [thread:$0]  %s15, 12544, %s17, [#allocation3], 256, 256, 16
    $region9: #{masif_wp_forward.1} parent=1 // pred_fallthru
      _
    // Predicated region
    $region10: #{masif_wp_forward.1} parent=1 // pred_check
      _
    $region11: #{masif_wp_forward.1} parent=1 // pred_check_branch
      %24 = sbr.rel (0) target = $region13
    $region12: #{masif_wp_forward.1} parent=1 // pred_region
      %26 = dma.done [#allocation3], 12544
    $region13: #{masif_wp_forward.1} parent=1 // pred_fallthru
      _
    %v28 = vld [vmem:[%s0] sm:$0xff]
    %v29 = vpack.c.bf16 %v28, %v28
    %v30 = vld [vmem:[#allocation2] sm:$0xff]
    %v31 = vld [vmem:[#allocation2 + $0x10] sm:$0xff]
    %v32 = vld [vmem:[#allocation2 + $0x20] sm:$0xff]
    %v33 = vld [vmem:[#allocation2 + $0x30] sm:$0xff]
    %v34 = vld [vmem:[#allocation2 + $0x40] sm:$0xff]
    %v35 = vld [vmem:[#allocation2 + $0x50] sm:$0xff]
    %v36 = vld [vmem:[#allocation2 + $0x60] sm:$0xff]
    %v37 = vld [vmem:[#allocation2 + $0x70] sm:$0xff]
    %v38 = vld [vmem:[#allocation2 + $0x80] sm:$0xff]
    %v39 = vld [vmem:[#allocation2 + $0x90] sm:$0xff]
    %v40 = vld [vmem:[#allocation2 + $0xa0] sm:$0xff]
    %v41 = vld [vmem:[#allocation2 + $0xb0] sm:$0xff]
    %v42 = vld [vmem:[#allocation2 + $0xc0] sm:$0xff]
    %v43 = vld [vmem:[#allocation2 + $0xd0] sm:$0xff]
    %v44 = vld [vmem:[#allocation2 + $0xe0] sm:$0xff]
    %v45 = vld [vmem:[#allocation2 + $0xf0] sm:$0xff]
    %v46 = vpack.c.bf16 %v31, %v30
    %v47 = vpack.c.bf16 %v33, %v32
    %v48 = vpack.c.bf16 %v35, %v34
    %v49 = vpack.c.bf16 %v37, %v36
    %v50 = vpack.c.bf16 %v39, %v38
    %v51 = vpack.c.bf16 %v41, %v40
    %v52 = vpack.c.bf16 %v43, %v42
    %v53 = vpack.c.bf16 %v45, %v44
    %v54 = vld [vmem:[#allocation2 + $0x300] ss:$0 sm:$0xff]
    %55 = vmatpush.bf16.msra.mxu0 %v53
    %56 = vmatpush.bf16.msra.mxu0 %v52
    %57 = vmatpush.bf16.msra.mxu0 %v51
    %58 = vmatpush.bf16.msra.mxu0 %v50
    %59 = vmatpush.bf16.msra.mxu0 %v49
    %60 = vmatpush.bf16.msra.mxu0 %v48
    %61 = vmatpush.bf16.msra.mxu0 %v47
    %62 = vmatpush.bf16.msra.mxu0 %v46
    %63 = vmatmul.bf16.gmra.mxu0 %v29
    %v64 = vpop.f32.mrf.mxu0
    %v65 = vadd.f32 %v54, %v64
    %v66 = vpop.f32.mrf.mxu0
    %67 = vdwg.mxu0
    %v68 = vmax.f32 %v65, 0.0
    %v69 = vpack.c.bf16 %v68, %v68
    %v70 = vld [vmem:[#allocation2 + $0x100] sm:$0xff]
    %v71 = vld [vmem:[#allocation2 + $0x110] sm:$0xff]
    %v72 = vpack.c.bf16 %v71, %v70
    %v73 = vld [vmem:[#allocation2 + $0x301] ss:$0 sm:$0xff]
    %vm74 = vcmask 130048
    %v76 = vsel %vm74, %v69, 0
    %78 = vmatpush.bf16.msra.mxu0 0
    %79 = vmatpush.bf16.msra.mxu0 0
    %80 = vmatpush.bf16.msra.mxu0 0
    %81 = vmatpush.bf16.msra.mxu0 0
    %82 = vmatpush.bf16.msra.mxu0 0
    %83 = vmatpush.bf16.msra.mxu0 0
    %84 = vmatpush.bf16.msra.mxu0 0
    %85 = vmatpush.bf16.msra.mxu0 %v72
    %86 = vmatmul.bf16.gmra.mxu0 %v76
    %v87 = vpop.f32.mrf.mxu0
    %v88 = vadd.f32 %v73, %v87
    %v89 = vpop.f32.mrf.mxu0
    %90 = vdwg.mxu0
    %v91 = vld [vmem:[%s0 + $0x8] sm:$0xff]
    %v92 = vld [vmem:[%s0 + $0x10] sm:$0xff]
    %v93 = vld [vmem:[%s0 + $0x18] sm:$0xff]
    %v94 = vld [vmem:[%s0 + $0x20] sm:$0xff]
    %v95 = vld [vmem:[%s0 + $0x28] sm:$0xff]
    %v96 = vld [vmem:[%s0 + $0x30] sm:$0xff]
    %v97 = vld [vmem:[%s0 + $0x38] sm:$0xff]
    %v98 = vld [vmem:[%s0 + $0x40] sm:$0xff]
    %v99 = vpack.c.bf16 %v92, %v91
    %v100 = vpack.c.bf16 %v94, %v93
    %v101 = vpack.c.bf16 %v96, %v95
    %v102 = vpack.c.bf16 %v98, %v97
    %v103 = vld [vmem:[#allocation2 + $0x120] sm:$0xff]
    %v104 = vld [vmem:[#allocation2 + $0x130] sm:$0xff]
    %v105 = vld [vmem:[#allocation2 + $0x140] sm:$0xff]
    %v106 = vld [vmem:[#allocation2 + $0x150] sm:$0xff]
    %v107 = vld [vmem:[#allocation2 + $0x160] sm:$0xff]
    %v108 = vld [vmem:[#allocation2 + $0x170] sm:$0xff]
    %v109 = vld [vmem:[#allocation2 + $0x180] sm:$0xff]
    %v110 = vld [vmem:[#allocation2 + $0x190] sm:$0xff]
    %v111 = vld [vmem:[#allocation2 + $0x1a0] sm:$0xff]
    %v112 = vld [vmem:[#allocation2 + $0x1b0] sm:$0xff]
    %v113 = vld [vmem:[#allocation2 + $0x1c0] sm:$0xff]
    %v114 = vld [vmem:[#allocation2 + $0x1d0] sm:$0xff]
    %v115 = vld [vmem:[#allocation2 + $0x1e0] sm:$0xff]
    %v116 = vld [vmem:[#allocation2 + $0x1f0] sm:$0xff]
    %v117 = vld [vmem:[#allocation2 + $0x200] sm:$0xff]
    %v118 = vld [vmem:[#allocation2 + $0x210] sm:$0xff]
    %v119 = vpack.c.bf16 %v104, %v103
    %v120 = vpack.c.bf16 %v106, %v105
    %v121 = vpack.c.bf16 %v108, %v107
    %v122 = vpack.c.bf16 %v110, %v109
    %v123 = vpack.c.bf16 %v112, %v111
    %v124 = vpack.c.bf16 %v114, %v113
    %v125 = vpack.c.bf16 %v116, %v115
    %v126 = vpack.c.bf16 %v118, %v117
    %v127 = vld [vmem:[#allocation2 + $0x302] ss:$0 sm:$0xff]
    %128 = vmatpush.bf16.msra.mxu0 %v126
    %129 = vmatpush.bf16.msra.mxu0 %v125
    %130 = vmatpush.bf16.msra.mxu0 %v124
    %131 = vmatpush.bf16.msra.mxu0 %v123
    %132 = vmatpush.bf16.msra.mxu0 %v122
    %133 = vmatpush.bf16.msra.mxu0 %v121
    %134 = vmatpush.bf16.msra.mxu0 %v120
    %135 = vmatpush.bf16.msra.mxu0 %v119
    %136 = vmatmul.bf16.gmra.mxu0 %v99
    %v137 = vpop.f32.mrf.mxu0
    %v138 = vadd.f32 %v127, %v137
    %v139 = vpop.f32.mrf.mxu0
    %v140 = vadd.f32 %v127, %v139
    %141 = vmatmul.bf16.gmra.mxu0 %v100
    %v142 = vpop.f32.mrf.mxu0
    %v143 = vadd.f32 %v127, %v142
    %v144 = vpop.f32.mrf.mxu0
    %v145 = vadd.f32 %v127, %v144
    %146 = vmatmul.bf16.gmra.mxu0 %v101
    %v147 = vpop.f32.mrf.mxu0
    %v148 = vadd.f32 %v127, %v147
    %v149 = vpop.f32.mrf.mxu0
    %v150 = vadd.f32 %v127, %v149
    %151 = vmatmul.bf16.gmra.mxu0 %v102
    %v152 = vpop.f32.mrf.mxu0
    %v153 = vadd.f32 %v127, %v152
    %v154 = vpop.f32.mrf.mxu0
    %v155 = vadd.f32 %v127, %v154
    %156 = vdwg.mxu0
    %v157 = vlaneseq
    %v158 = vand.u32 %v157, 127
    %vm159 = vcmp.ge.s32.totalorder %v158, 64
    %vm160 = vcmp.lt.s32.totalorder %v158, 96
    %vm161 = vmand %vm159, %vm160
    %v162 = vsel %vm161, 1.0, 0.5
    %v163 = vsel %vm161, 0.0, 0.5
    %v164 = vld [vmem:[#allocation2 + $0x220] sm:$0xff]
    %v165 = vld [vmem:[#allocation2 + $0x228] sm:$0xff]
    %v166 = vld [vmem:[#allocation2 + $0x230] sm:$0xff]
    %v167 = vld [vmem:[#allocation2 + $0x238] sm:$0xff]
    %v168 = vld [vmem:[#allocation2 + $0x240] sm:$0xff]
    %v169 = vld [vmem:[#allocation2 + $0x248] sm:$0xff]
    %v170 = vld [vmem:[#allocation2 + $0x250] sm:$0xff]
    %v171 = vld [vmem:[#allocation2 + $0x258] sm:$0xff]
    %v172 = vpack.c.bf16 %v165, %v164
    %v173 = vpack.c.bf16 %v167, %v166
    %v174 = vpack.c.bf16 %v169, %v168
    %v175 = vpack.c.bf16 %v171, %v170
    %v176 = vld [vmem:[#allocation2 + $0x260] sm:$0xff]
    %v177 = vld [vmem:[#allocation2 + $0x270] sm:$0xff]
    %v178 = vld [vmem:[#allocation2 + $0x280] sm:$0xff]
    %v179 = vld [vmem:[#allocation2 + $0x290] sm:$0xff]
    %v180 = vpack.c.bf16 %v177, %v176
    %v181 = vpack.c.bf16 %v179, %v178
    %v182 = vld [vmem:[#allocation2 + $0x303] ss:$0 sm:$0xff]
    %v183 = vpack.c.bf16 %v88, %v88
    %v188 = vunpack.c.l.b16 %v172
    %v189 = vunpack.c.l.b16 %v173
    %v190 = vunpack.c.l.b16 %v174
    %v191 = vunpack.c.l.b16 %v175
    %v192 = vpack.c.b16 %v189, %v188
    %v193 = vpack.c.b16 %v191, %v190
    %vm196 = vcmask 261120
    %v198 = vsel %vm196, %v183, 0
    %200 = vmatpush.bf16.msra.mxu0 0
    %201 = vmatpush.bf16.msra.mxu0 0
    %202 = vmatpush.bf16.msra.mxu0 0
    %203 = vmatpush.bf16.msra.mxu0 0
    %204 = vmatpush.bf16.msra.mxu0 0
    %205 = vmatpush.bf16.msra.mxu0 0
    %206 = vmatpush.bf16.msra.mxu0 %v193
    %207 = vmatpush.bf16.msra.mxu0 %v192
    %208 = vmatmul.bf16.gmra.mxu0 %v198
    %v209 = vpop.f32.mrf.mxu0
    %v210 = vadd.f32 0.0, %v209
    %v211 = vpop.f32.mrf.mxu0
    %212 = vdwg.mxu0
    %213 = vmatpush.bf16.msra.mxu0 0
    %214 = vmatpush.bf16.msra.mxu0 0
    %215 = vmatpush.bf16.msra.mxu0 0
    %216 = vmatpush.bf16.msra.mxu0 0
    %217 = vmatpush.bf16.msra.mxu0 0
    %218 = vmatpush.bf16.msra.mxu0 0
    %219 = vmatpush.bf16.msra.mxu0 %v181
    %220 = vmatpush.bf16.msra.mxu0 %v180
    %221 = vmatmul.bf16.gmra.mxu0 %v198
    %v222 = vpop.f32.mrf.mxu0
    %v223 = vadd.f32 %v182, %v222
    %v224 = vpop.f32.mrf.mxu0
    %225 = vdwg.mxu0
    %v226 = vadd.f32 %v138, %v210
    %v227 = vmul.f32 %v226, %v162
    %v228 = vtanh.pop %v227
    %v229 = vmul.f32 %v228, %v162
    %v230 = vadd.f32 %v229, %v163
    %v231 = vmul.f32 %v230, 0.0
    %233 = vrot.lane.b32.xlu0 %v230, 64
    %v234 = vpop.permute.xlu0 %233
    %v236 = vmul.f32 %v230, %v234
    %238 = vrot.lane.b32.xlu0 %v236, 32
    %v239 = vpop.permute.xlu0 %238
    %v241 = vadd.f32 %v231, %v239
    %v242 = vtanh.pop %v241
    %244 = vrot.lane.b32.xlu0 %v242, 64
    %v245 = vpop.permute.xlu0 %244
    %v247 = vmul.f32 %v230, %v245
    %v248 = vpack.c.bf16 %v247, %v247
    %250 = vrot.lane.b32.xlu0 %v248, 32
    %v251 = vpop.permute.xlu0 %250
    %v252 = vunpack.c.h.b16 %v172
    %v253 = vunpack.c.h.b16 %v173
    %v254 = vunpack.c.h.b16 %v174
    %v255 = vunpack.c.h.b16 %v175
    %v256 = vpack.c.b16 %v253, %v252
    %v257 = vpack.c.b16 %v255, %v254
    %v261 = vsel %vm196, %v251, 0
    %263 = vmatpush.bf16.msra.mxu0 0
    %264 = vmatpush.bf16.msra.mxu0 0
    %265 = vmatpush.bf16.msra.mxu0 0
    %266 = vmatpush.bf16.msra.mxu0 0
    %267 = vmatpush.bf16.msra.mxu0 0
    %268 = vmatpush.bf16.msra.mxu0 0
    %269 = vmatpush.bf16.msra.mxu0 %v193
    %270 = vmatpush.bf16.msra.mxu0 %v192
    %271 = vmatmul.bf16.gmra.mxu0 %v261
    %v272 = vpop.f32.mrf.mxu0
    %v273 = vadd.f32 0.0, %v272
    %v274 = vpop.f32.mrf.mxu0
    %275 = vdwg.mxu0
    %276 = vmatpush.bf16.msra.mxu0 0
    %277 = vmatpush.bf16.msra.mxu0 0
    %278 = vmatpush.bf16.msra.mxu0 0
    %279 = vmatpush.bf16.msra.mxu0 0
    %280 = vmatpush.bf16.msra.mxu0 0
    %281 = vmatpush.bf16.msra.mxu0 0
    %282 = vmatpush.bf16.msra.mxu0 %v257
    %283 = vmatpush.bf16.msra.mxu0 %v256
    %284 = vmatmul.bf16.gmra.mxu0 %v261
    %v285 = vpop.f32.mrf.mxu0
    %v286 = vadd.f32 0.0, %v285
    %v287 = vpop.f32.mrf.mxu0
    %288 = vdwg.mxu0
    %v289 = vadd.f32 %v286, %v223
    %v290 = vmul.f32 %v289, %v162
    %v291 = vtanh.pop %v290
    %v292 = vmul.f32 %v291, %v162
    %v293 = vadd.f32 %v292, %v163
    %v294 = vmul.f32 %v293, 0.0
    %296 = vrot.lane.b32.xlu0 %v293, 64
    %v297 = vpop.permute.xlu0 %296
    %v299 = vmul.f32 %v293, %v297
    %301 = vrot.lane.b32.xlu0 %v299, 32
    %v302 = vpop.permute.xlu0 %301
    %v304 = vadd.f32 %v294, %v302
    %v305 = vtanh.pop %v304
    %307 = vrot.lane.b32.xlu0 %v305, 64
    %v308 = vpop.permute.xlu0 %307
    %v310 = vmul.f32 %v293, %v308
    %v311 = vpack.c.bf16 %v310, %v310
    %313 = vrot.lane.b32.xlu0 %v311, 32
    %v314 = vpop.permute.xlu0 %313
    %v316 = vsel %vm196, %v314, 0
    %318 = vmatpush.bf16.msra.mxu0 0
    %319 = vmatpush.bf16.msra.mxu0 0
    %320 = vmatpush.bf16.msra.mxu0 0
    %321 = vmatpush.bf16.msra.mxu0 0
    %322 = vmatpush.bf16.msra.mxu0 0
    %323 = vmatpush.bf16.msra.mxu0 0
    %324 = vmatpush.bf16.msra.mxu0 %v181
    %325 = vmatpush.bf16.msra.mxu0 %v180
    %326 = vmatmul.bf16.gmra.mxu0 %v316
    %v327 = vpop.f32.mrf.mxu0
    %v328 = vadd.f32 %v182, %v327
    %v329 = vpop.f32.mrf.mxu0
    %330 = vdwg.mxu0
    %v331 = vadd.f32 %v140, %v273
    %v332 = vmul.f32 %v331, %v162
    %v333 = vtanh.pop %v332
    %v334 = vmul.f32 %v333, %v162
    %v335 = vadd.f32 %v334, %v163
    %v336 = vmul.f32 %v335, %v241
    %338 = vrot.lane.b32.xlu0 %v335, 64
    %v339 = vpop.permute.xlu0 %338
    %v341 = vmul.f32 %v335, %v339
    %343 = vrot.lane.b32.xlu0 %v341, 32
    %v344 = vpop.permute.xlu0 %343
    %v346 = vadd.f32 %v336, %v344
    %v347 = vtanh.pop %v346
    %349 = vrot.lane.b32.xlu0 %v347, 64
    %v350 = vpop.permute.xlu0 %349
    %v352 = vmul.f32 %v335, %v350
    %v353 = vpack.c.bf16 %v352, %v352
    %355 = vrot.lane.b32.xlu0 %v353, 32
    %v356 = vpop.permute.xlu0 %355
    %v358 = vsel %vm196, %v356, 0
    %360 = vmatpush.bf16.msra.mxu0 0
    %361 = vmatpush.bf16.msra.mxu0 0
    %362 = vmatpush.bf16.msra.mxu0 0
    %363 = vmatpush.bf16.msra.mxu0 0
    %364 = vmatpush.bf16.msra.mxu0 0
    %365 = vmatpush.bf16.msra.mxu0 0
    %366 = vmatpush.bf16.msra.mxu0 %v193
    %367 = vmatpush.bf16.msra.mxu0 %v192
    %368 = vmatmul.bf16.gmra.mxu0 %v358
    %v369 = vpop.f32.mrf.mxu0
    %v370 = vadd.f32 0.0, %v369
    %v371 = vpop.f32.mrf.mxu0
    %372 = vdwg.mxu0
    %373 = vmatpush.bf16.msra.mxu0 0
    %374 = vmatpush.bf16.msra.mxu0 0
    %375 = vmatpush.bf16.msra.mxu0 0
    %376 = vmatpush.bf16.msra.mxu0 0
    %377 = vmatpush.bf16.msra.mxu0 0
    %378 = vmatpush.bf16.msra.mxu0 0
    %379 = vmatpush.bf16.msra.mxu0 %v257
    %380 = vmatpush.bf16.msra.mxu0 %v256
    %381 = vmatmul.bf16.gmra.mxu0 %v358
    %v382 = vpop.f32.mrf.mxu0
    %v383 = vadd.f32 0.0, %v382
    %v384 = vpop.f32.mrf.mxu0
    %385 = vdwg.mxu0
    %v386 = vadd.f32 %v383, %v328
    %v387 = vmul.f32 %v386, %v162
    %v388 = vtanh.pop %v387
    %v389 = vmul.f32 %v388, %v162
    %v390 = vadd.f32 %v389, %v163
    %v391 = vmul.f32 %v390, %v304
    %393 = vrot.lane.b32.xlu0 %v390, 64
    %v394 = vpop.permute.xlu0 %393
    %v396 = vmul.f32 %v390, %v394
    %398 = vrot.lane.b32.xlu0 %v396, 32
    %v399 = vpop.permute.xlu0 %398
    %v401 = vadd.f32 %v391, %v399
    %v402 = vtanh.pop %v401
    %404 = vrot.lane.b32.xlu0 %v402, 64
    %v405 = vpop.permute.xlu0 %404
    %v407 = vmul.f32 %v390, %v405
    %v408 = vpack.c.bf16 %v407, %v407
    %410 = vrot.lane.b32.xlu0 %v408, 32
    %v411 = vpop.permute.xlu0 %410
    %v413 = vsel %vm196, %v411, 0
    %415 = vmatpush.bf16.msra.mxu0 0
    %416 = vmatpush.bf16.msra.mxu0 0
    %417 = vmatpush.bf16.msra.mxu0 0
    %418 = vmatpush.bf16.msra.mxu0 0
    %419 = vmatpush.bf16.msra.mxu0 0
    %420 = vmatpush.bf16.msra.mxu0 0
    %421 = vmatpush.bf16.msra.mxu0 %v181
    %422 = vmatpush.bf16.msra.mxu0 %v180
    %423 = vmatmul.bf16.gmra.mxu0 %v413
    %v424 = vpop.f32.mrf.mxu0
    %v425 = vadd.f32 %v182, %v424
    %v426 = vpop.f32.mrf.mxu0
    %427 = vdwg.mxu0
    %v428 = vadd.f32 %v143, %v370
    %v429 = vmul.f32 %v428, %v162
    %v430 = vtanh.pop %v429
    %v431 = vmul.f32 %v430, %v162
    %v432 = vadd.f32 %v431, %v163
    %v433 = vmul.f32 %v432, %v346
    %435 = vrot.lane.b32.xlu0 %v432, 64
    %v436 = vpop.permute.xlu0 %435
    %v438 = vmul.f32 %v432, %v436
    %440 = vrot.lane.b32.xlu0 %v438, 32
    %v441 = vpop.permute.xlu0 %440
    %v443 = vadd.f32 %v433, %v441
    %v444 = vtanh.pop %v443
    %446 = vrot.lane.b32.xlu0 %v444, 64
    %v447 = vpop.permute.xlu0 %446
    %v449 = vmul.f32 %v432, %v447
    %v450 = vpack.c.bf16 %v449, %v449
    %452 = vrot.lane.b32.xlu0 %v450, 32
    %v453 = vpop.permute.xlu0 %452
    %v455 = vsel %vm196, %v453, 0
    %457 = vmatpush.bf16.msra.mxu0 0
    %458 = vmatpush.bf16.msra.mxu0 0
    %459 = vmatpush.bf16.msra.mxu0 0
    %460 = vmatpush.bf16.msra.mxu0 0
    %461 = vmatpush.bf16.msra.mxu0 0
    %462 = vmatpush.bf16.msra.mxu0 0
    %463 = vmatpush.bf16.msra.mxu0 %v193
    %464 = vmatpush.bf16.msra.mxu0 %v192
    %465 = vmatmul.bf16.gmra.mxu0 %v455
    %v466 = vpop.f32.mrf.mxu0
    %v467 = vadd.f32 0.0, %v466
    %v468 = vpop.f32.mrf.mxu0
    %469 = vdwg.mxu0
    %470 = vmatpush.bf16.msra.mxu0 0
    %471 = vmatpush.bf16.msra.mxu0 0
    %472 = vmatpush.bf16.msra.mxu0 0
    %473 = vmatpush.bf16.msra.mxu0 0
    %474 = vmatpush.bf16.msra.mxu0 0
    %475 = vmatpush.bf16.msra.mxu0 0
    %476 = vmatpush.bf16.msra.mxu0 %v257
    %477 = vmatpush.bf16.msra.mxu0 %v256
    %478 = vmatmul.bf16.gmra.mxu0 %v455
    %v479 = vpop.f32.mrf.mxu0
    %v480 = vadd.f32 0.0, %v479
    %v481 = vpop.f32.mrf.mxu0
    %482 = vdwg.mxu0
    %v483 = vadd.f32 %v480, %v425
    %v484 = vmul.f32 %v483, %v162
    %v485 = vtanh.pop %v484
    %v486 = vmul.f32 %v485, %v162
    %v487 = vadd.f32 %v486, %v163
    %v488 = vmul.f32 %v487, %v401
    %490 = vrot.lane.b32.xlu0 %v487, 64
    %v491 = vpop.permute.xlu0 %490
    %v493 = vmul.f32 %v487, %v491
    %495 = vrot.lane.b32.xlu0 %v493, 32
    %v496 = vpop.permute.xlu0 %495
    %v498 = vadd.f32 %v488, %v496
    %v499 = vtanh.pop %v498
    %501 = vrot.lane.b32.xlu0 %v499, 64
    %v502 = vpop.permute.xlu0 %501
    %v504 = vmul.f32 %v487, %v502
    %v505 = vpack.c.bf16 %v504, %v504
    %507 = vrot.lane.b32.xlu0 %v505, 32
    %v508 = vpop.permute.xlu0 %507
    %v510 = vsel %vm196, %v508, 0
    %512 = vmatpush.bf16.msra.mxu0 0
    %513 = vmatpush.bf16.msra.mxu0 0
    %514 = vmatpush.bf16.msra.mxu0 0
    %515 = vmatpush.bf16.msra.mxu0 0
    %516 = vmatpush.bf16.msra.mxu0 0
    %517 = vmatpush.bf16.msra.mxu0 0
    %518 = vmatpush.bf16.msra.mxu0 %v181
    %519 = vmatpush.bf16.msra.mxu0 %v180
    %520 = vmatmul.bf16.gmra.mxu0 %v510
    %v521 = vpop.f32.mrf.mxu0
    %v522 = vadd.f32 %v182, %v521
    %v523 = vpop.f32.mrf.mxu0
    %524 = vdwg.mxu0
    %v525 = vadd.f32 %v145, %v467
    %v526 = vmul.f32 %v525, %v162
    %v527 = vtanh.pop %v526
    %v528 = vmul.f32 %v527, %v162
    %v529 = vadd.f32 %v528, %v163
    %v530 = vmul.f32 %v529, %v443
    %532 = vrot.lane.b32.xlu0 %v529, 64
    %v533 = vpop.permute.xlu0 %532
    %v535 = vmul.f32 %v529, %v533
    %537 = vrot.lane.b32.xlu0 %v535, 32
    %v538 = vpop.permute.xlu0 %537
    %v540 = vadd.f32 %v530, %v538
    %v541 = vtanh.pop %v540
    %543 = vrot.lane.b32.xlu0 %v541, 64
    %v544 = vpop.permute.xlu0 %543
    %v546 = vmul.f32 %v529, %v544
    %v547 = vpack.c.bf16 %v546, %v546
    %549 = vrot.lane.b32.xlu0 %v547, 32
    %v550 = vpop.permute.xlu0 %549
    %v552 = vsel %vm196, %v550, 0
    %554 = vmatpush.bf16.msra.mxu0 0
    %555 = vmatpush.bf16.msra.mxu0 0
    %556 = vmatpush.bf16.msra.mxu0 0
    %557 = vmatpush.bf16.msra.mxu0 0
    %558 = vmatpush.bf16.msra.mxu0 0
    %559 = vmatpush.bf16.msra.mxu0 0
    %560 = vmatpush.bf16.msra.mxu0 %v193
    %561 = vmatpush.bf16.msra.mxu0 %v192
    %562 = vmatmul.bf16.gmra.mxu0 %v552
    %v563 = vpop.f32.mrf.mxu0
    %v564 = vadd.f32 0.0, %v563
    %v565 = vpop.f32.mrf.mxu0
    %566 = vdwg.mxu0
    %567 = vmatpush.bf16.msra.mxu0 0
    %568 = vmatpush.bf16.msra.mxu0 0
    %569 = vmatpush.bf16.msra.mxu0 0
    %570 = vmatpush.bf16.msra.mxu0 0
    %571 = vmatpush.bf16.msra.mxu0 0
    %572 = vmatpush.bf16.msra.mxu0 0
    %573 = vmatpush.bf16.msra.mxu0 %v257
    %574 = vmatpush.bf16.msra.mxu0 %v256
    %575 = vmatmul.bf16.gmra.mxu0 %v552
    %v576 = vpop.f32.mrf.mxu0
    %v577 = vadd.f32 0.0, %v576
    %v578 = vpop.f32.mrf.mxu0
    %579 = vdwg.mxu0
    %v580 = vadd.f32 %v577, %v522
    %v581 = vmul.f32 %v580, %v162
    %v582 = vtanh.pop %v581
    %v583 = vmul.f32 %v582, %v162
    %v584 = vadd.f32 %v583, %v163
    %v585 = vmul.f32 %v584, %v498
    %587 = vrot.lane.b32.xlu0 %v584, 64
    %v588 = vpop.permute.xlu0 %587
    %v590 = vmul.f32 %v584, %v588
    %592 = vrot.lane.b32.xlu0 %v590, 32
    %v593 = vpop.permute.xlu0 %592
    %v595 = vadd.f32 %v585, %v593
    %v596 = vtanh.pop %v595
    %598 = vrot.lane.b32.xlu0 %v596, 64
    %v599 = vpop.permute.xlu0 %598
    %v601 = vmul.f32 %v584, %v599
    %v602 = vpack.c.bf16 %v601, %v601
    %604 = vrot.lane.b32.xlu0 %v602, 32
    %v605 = vpop.permute.xlu0 %604
    %v607 = vsel %vm196, %v605, 0
    %609 = vmatpush.bf16.msra.mxu0 0
    %610 = vmatpush.bf16.msra.mxu0 0
    %611 = vmatpush.bf16.msra.mxu0 0
    %612 = vmatpush.bf16.msra.mxu0 0
    %613 = vmatpush.bf16.msra.mxu0 0
    %614 = vmatpush.bf16.msra.mxu0 0
    %615 = vmatpush.bf16.msra.mxu0 %v181
    %616 = vmatpush.bf16.msra.mxu0 %v180
    %617 = vmatmul.bf16.gmra.mxu0 %v607
    %v618 = vpop.f32.mrf.mxu0
    %v619 = vadd.f32 %v182, %v618
    %v620 = vpop.f32.mrf.mxu0
    %621 = vdwg.mxu0
    %v622 = vadd.f32 %v148, %v564
    %v623 = vmul.f32 %v622, %v162
    %v624 = vtanh.pop %v623
    %v625 = vmul.f32 %v624, %v162
    %v626 = vadd.f32 %v625, %v163
    %v627 = vmul.f32 %v626, %v540
    %629 = vrot.lane.b32.xlu0 %v626, 64
    %v630 = vpop.permute.xlu0 %629
    %v632 = vmul.f32 %v626, %v630
    %634 = vrot.lane.b32.xlu0 %v632, 32
    %v635 = vpop.permute.xlu0 %634
    %v637 = vadd.f32 %v627, %v635
    %v638 = vtanh.pop %v637
    %640 = vrot.lane.b32.xlu0 %v638, 64
    %v641 = vpop.permute.xlu0 %640
    %v643 = vmul.f32 %v626, %v641
    %v644 = vpack.c.bf16 %v643, %v643
    %646 = vrot.lane.b32.xlu0 %v644, 32
    %v647 = vpop.permute.xlu0 %646
    %v649 = vsel %vm196, %v647, 0
    %651 = vmatpush.bf16.msra.mxu0 0
    %652 = vmatpush.bf16.msra.mxu0 0
    %653 = vmatpush.bf16.msra.mxu0 0
    %654 = vmatpush.bf16.msra.mxu0 0
    %655 = vmatpush.bf16.msra.mxu0 0
    %656 = vmatpush.bf16.msra.mxu0 0
    %657 = vmatpush.bf16.msra.mxu0 %v193
    %658 = vmatpush.bf16.msra.mxu0 %v192
    %659 = vmatmul.bf16.gmra.mxu0 %v649
    %v660 = vpop.f32.mrf.mxu0
    %v661 = vadd.f32 0.0, %v660
    %v662 = vpop.f32.mrf.mxu0
    %663 = vdwg.mxu0
    %664 = vmatpush.bf16.msra.mxu0 0
    %665 = vmatpush.bf16.msra.mxu0 0
    %666 = vmatpush.bf16.msra.mxu0 0
    %667 = vmatpush.bf16.msra.mxu0 0
    %668 = vmatpush.bf16.msra.mxu0 0
    %669 = vmatpush.bf16.msra.mxu0 0
    %670 = vmatpush.bf16.msra.mxu0 %v257
    %671 = vmatpush.bf16.msra.mxu0 %v256
    %672 = vmatmul.bf16.gmra.mxu0 %v649
    %v673 = vpop.f32.mrf.mxu0
    %v674 = vadd.f32 0.0, %v673
    %v675 = vpop.f32.mrf.mxu0
    %676 = vdwg.mxu0
    %v677 = vadd.f32 %v674, %v619
    %v678 = vmul.f32 %v677, %v162
    %v679 = vtanh.pop %v678
    %v680 = vmul.f32 %v679, %v162
    %v681 = vadd.f32 %v680, %v163
    %v682 = vmul.f32 %v681, %v595
    %684 = vrot.lane.b32.xlu0 %v681, 64
    %v685 = vpop.permute.xlu0 %684
    %v687 = vmul.f32 %v681, %v685
    %689 = vrot.lane.b32.xlu0 %v687, 32
    %v690 = vpop.permute.xlu0 %689
    %v692 = vadd.f32 %v682, %v690
    %v693 = vtanh.pop %v692
    %695 = vrot.lane.b32.xlu0 %v693, 64
    %v696 = vpop.permute.xlu0 %695
    %v698 = vmul.f32 %v681, %v696
    %v699 = vpack.c.bf16 %v698, %v698
    %701 = vrot.lane.b32.xlu0 %v699, 32
    %v702 = vpop.permute.xlu0 %701
    %v704 = vsel %vm196, %v702, 0
    %706 = vmatpush.bf16.msra.mxu0 0
    %707 = vmatpush.bf16.msra.mxu0 0
    %708 = vmatpush.bf16.msra.mxu0 0
    %709 = vmatpush.bf16.msra.mxu0 0
    %710 = vmatpush.bf16.msra.mxu0 0
    %711 = vmatpush.bf16.msra.mxu0 0
    %712 = vmatpush.bf16.msra.mxu0 %v181
    %713 = vmatpush.bf16.msra.mxu0 %v180
    %714 = vmatmul.bf16.gmra.mxu0 %v704
    %v715 = vpop.f32.mrf.mxu0
    %v716 = vadd.f32 %v182, %v715
    %v717 = vpop.f32.mrf.mxu0
    %718 = vdwg.mxu0
    %v719 = vadd.f32 %v150, %v661
    %v720 = vmul.f32 %v719, %v162
    %v721 = vtanh.pop %v720
    %v722 = vmul.f32 %v721, %v162
    %v723 = vadd.f32 %v722, %v163
    %v724 = vmul.f32 %v723, %v637
    %726 = vrot.lane.b32.xlu0 %v723, 64
    %v727 = vpop.permute.xlu0 %726
    %v729 = vmul.f32 %v723, %v727
    %731 = vrot.lane.b32.xlu0 %v729, 32
    %v732 = vpop.permute.xlu0 %731
    %v734 = vadd.f32 %v724, %v732
    %v735 = vtanh.pop %v734
    %737 = vrot.lane.b32.xlu0 %v735, 64
    %v738 = vpop.permute.xlu0 %737
    %v740 = vmul.f32 %v723, %v738
    %v741 = vpack.c.bf16 %v740, %v740
    %743 = vrot.lane.b32.xlu0 %v741, 32
    %v744 = vpop.permute.xlu0 %743
    %v746 = vsel %vm196, %v744, 0
    %748 = vmatpush.bf16.msra.mxu0 0
    %749 = vmatpush.bf16.msra.mxu0 0
    %750 = vmatpush.bf16.msra.mxu0 0
    %751 = vmatpush.bf16.msra.mxu0 0
    %752 = vmatpush.bf16.msra.mxu0 0
    %753 = vmatpush.bf16.msra.mxu0 0
    %754 = vmatpush.bf16.msra.mxu0 %v193
    %755 = vmatpush.bf16.msra.mxu0 %v192
    %756 = vmatmul.bf16.gmra.mxu0 %v746
    %v757 = vpop.f32.mrf.mxu0
    %v758 = vadd.f32 0.0, %v757
    %v759 = vpop.f32.mrf.mxu0
    %760 = vdwg.mxu0
    %761 = vmatpush.bf16.msra.mxu0 0
    %762 = vmatpush.bf16.msra.mxu0 0
    %763 = vmatpush.bf16.msra.mxu0 0
    %764 = vmatpush.bf16.msra.mxu0 0
    %765 = vmatpush.bf16.msra.mxu0 0
    %766 = vmatpush.bf16.msra.mxu0 0
    %767 = vmatpush.bf16.msra.mxu0 %v257
    %768 = vmatpush.bf16.msra.mxu0 %v256
    %769 = vmatmul.bf16.gmra.mxu0 %v746
    %v770 = vpop.f32.mrf.mxu0
    %v771 = vadd.f32 0.0, %v770
    %v772 = vpop.f32.mrf.mxu0
    %773 = vdwg.mxu0
    %v774 = vadd.f32 %v771, %v716
    %v775 = vmul.f32 %v774, %v162
    %v776 = vtanh.pop %v775
    %v777 = vmul.f32 %v776, %v162
    %v778 = vadd.f32 %v777, %v163
    %v779 = vmul.f32 %v778, %v692
    %781 = vrot.lane.b32.xlu0 %v778, 64
    %v782 = vpop.permute.xlu0 %781
    %v784 = vmul.f32 %v778, %v782
    %786 = vrot.lane.b32.xlu0 %v784, 32
    %v787 = vpop.permute.xlu0 %786
    %v789 = vadd.f32 %v779, %v787
    %v790 = vtanh.pop %v789
    %792 = vrot.lane.b32.xlu0 %v790, 64
    %v793 = vpop.permute.xlu0 %792
    %v795 = vmul.f32 %v778, %v793
    %v796 = vpack.c.bf16 %v795, %v795
    %798 = vrot.lane.b32.xlu0 %v796, 32
    %v799 = vpop.permute.xlu0 %798
    %v801 = vsel %vm196, %v799, 0
    %803 = vmatpush.bf16.msra.mxu0 0
    %804 = vmatpush.bf16.msra.mxu0 0
    %805 = vmatpush.bf16.msra.mxu0 0
    %806 = vmatpush.bf16.msra.mxu0 0
    %807 = vmatpush.bf16.msra.mxu0 0
    %808 = vmatpush.bf16.msra.mxu0 0
    %809 = vmatpush.bf16.msra.mxu0 %v181
    %810 = vmatpush.bf16.msra.mxu0 %v180
    %811 = vmatmul.bf16.gmra.mxu0 %v801
    %v812 = vpop.f32.mrf.mxu0
    %v813 = vadd.f32 %v182, %v812
    %v814 = vpop.f32.mrf.mxu0
    %815 = vdwg.mxu0
    %v816 = vadd.f32 %v153, %v758
    %v817 = vmul.f32 %v816, %v162
    %v818 = vtanh.pop %v817
    %v819 = vmul.f32 %v818, %v162
    %v820 = vadd.f32 %v819, %v163
    %v821 = vmul.f32 %v820, %v734
    %823 = vrot.lane.b32.xlu0 %v820, 64
    %v824 = vpop.permute.xlu0 %823
    %v826 = vmul.f32 %v820, %v824
    %828 = vrot.lane.b32.xlu0 %v826, 32
    %v829 = vpop.permute.xlu0 %828
    %v831 = vadd.f32 %v821, %v829
    %v832 = vtanh.pop %v831
    %834 = vrot.lane.b32.xlu0 %v832, 64
    %v835 = vpop.permute.xlu0 %834
    %v837 = vmul.f32 %v820, %v835
    %v838 = vpack.c.bf16 %v837, %v837
    %840 = vrot.lane.b32.xlu0 %v838, 32
    %v841 = vpop.permute.xlu0 %840
    %v843 = vsel %vm196, %v841, 0
    %845 = vmatpush.bf16.msra.mxu0 0
    %846 = vmatpush.bf16.msra.mxu0 0
    %847 = vmatpush.bf16.msra.mxu0 0
    %848 = vmatpush.bf16.msra.mxu0 0
    %849 = vmatpush.bf16.msra.mxu0 0
    %850 = vmatpush.bf16.msra.mxu0 0
    %851 = vmatpush.bf16.msra.mxu0 %v193
    %852 = vmatpush.bf16.msra.mxu0 %v192
    %853 = vmatmul.bf16.gmra.mxu0 %v843
    %v854 = vpop.f32.mrf.mxu0
    %v855 = vadd.f32 0.0, %v854
    %v856 = vpop.f32.mrf.mxu0
    %857 = vdwg.mxu0
    %858 = vmatpush.bf16.msra.mxu0 0
    %859 = vmatpush.bf16.msra.mxu0 0
    %860 = vmatpush.bf16.msra.mxu0 0
    %861 = vmatpush.bf16.msra.mxu0 0
    %862 = vmatpush.bf16.msra.mxu0 0
    %863 = vmatpush.bf16.msra.mxu0 0
    %864 = vmatpush.bf16.msra.mxu0 %v257
    %865 = vmatpush.bf16.msra.mxu0 %v256
    %866 = vmatmul.bf16.gmra.mxu0 %v843
    %v867 = vpop.f32.mrf.mxu0
    %v868 = vadd.f32 0.0, %v867
    %v869 = vpop.f32.mrf.mxu0
    %870 = vdwg.mxu0
    %v871 = vadd.f32 %v868, %v813
    %v872 = vmul.f32 %v871, %v162
    %v873 = vtanh.pop %v872
    %v874 = vmul.f32 %v873, %v162
    %v875 = vadd.f32 %v874, %v163
    %v876 = vmul.f32 %v875, %v789
    %878 = vrot.lane.b32.xlu0 %v875, 64
    %v879 = vpop.permute.xlu0 %878
    %v881 = vmul.f32 %v875, %v879
    %883 = vrot.lane.b32.xlu0 %v881, 32
    %v884 = vpop.permute.xlu0 %883
    %v886 = vadd.f32 %v876, %v884
    %v887 = vtanh.pop %v886
    %889 = vrot.lane.b32.xlu0 %v887, 64
    %v890 = vpop.permute.xlu0 %889
    %v892 = vmul.f32 %v875, %v890
    %v893 = vpack.c.bf16 %v892, %v892
    %895 = vrot.lane.b32.xlu0 %v893, 32
    %v896 = vpop.permute.xlu0 %895
    %v898 = vsel %vm196, %v896, 0
    %900 = vmatpush.bf16.msra.mxu0 0
    %901 = vmatpush.bf16.msra.mxu0 0
    %902 = vmatpush.bf16.msra.mxu0 0
    %903 = vmatpush.bf16.msra.mxu0 0
    %904 = vmatpush.bf16.msra.mxu0 0
    %905 = vmatpush.bf16.msra.mxu0 0
    %906 = vmatpush.bf16.msra.mxu0 %v181
    %907 = vmatpush.bf16.msra.mxu0 %v180
    %908 = vmatmul.bf16.gmra.mxu0 %v898
    %v909 = vpop.f32.mrf.mxu0
    %v910 = vadd.f32 %v182, %v909
    %v911 = vpop.f32.mrf.mxu0
    %912 = vdwg.mxu0
    %v913 = vadd.f32 %v155, %v855
    %v914 = vmul.f32 %v913, %v162
    %v915 = vtanh.pop %v914
    %v916 = vmul.f32 %v915, %v162
    %v917 = vadd.f32 %v916, %v163
    %v918 = vmul.f32 %v917, %v831
    %920 = vrot.lane.b32.xlu0 %v917, 64
    %v921 = vpop.permute.xlu0 %920
    %v923 = vmul.f32 %v917, %v921
    %925 = vrot.lane.b32.xlu0 %v923, 32
    %v926 = vpop.permute.xlu0 %925
    %v928 = vadd.f32 %v918, %v926
    %v929 = vtanh.pop %v928
    %931 = vrot.lane.b32.xlu0 %v929, 64
    %v932 = vpop.permute.xlu0 %931
    %v934 = vmul.f32 %v917, %v932
    %v935 = vpack.c.bf16 %v934, %v934
    %937 = vrot.lane.b32.xlu0 %v935, 32
    %v938 = vpop.permute.xlu0 %937
    %v940 = vsel %vm196, %v938, 0
    %942 = vmatpush.bf16.msra.mxu0 0
    %943 = vmatpush.bf16.msra.mxu0 0
    %944 = vmatpush.bf16.msra.mxu0 0
    %945 = vmatpush.bf16.msra.mxu0 0
    %946 = vmatpush.bf16.msra.mxu0 0
    %947 = vmatpush.bf16.msra.mxu0 0
    %948 = vmatpush.bf16.msra.mxu0 %v257
    %949 = vmatpush.bf16.msra.mxu0 %v256
    %950 = vmatmul.bf16.gmra.mxu0 %v940
    %v951 = vpop.f32.mrf.mxu0
    %v952 = vadd.f32 0.0, %v951
    %v953 = vpop.f32.mrf.mxu0
    %954 = vdwg.mxu0
    %v955 = vadd.f32 %v952, %v910
    %v956 = vmul.f32 %v955, %v162
    %v957 = vtanh.pop %v956
    %v958 = vmul.f32 %v957, %v162
    %v959 = vadd.f32 %v958, %v163
    %v960 = vmul.f32 %v959, %v886
    %962 = vrot.lane.b32.xlu0 %v959, 64
    %v963 = vpop.permute.xlu0 %962
    %v965 = vmul.f32 %v959, %v963
    %967 = vrot.lane.b32.xlu0 %v965, 32
    %v968 = vpop.permute.xlu0 %967
    %v970 = vadd.f32 %v960, %v968
    %v971 = vtanh.pop %v970
    %973 = vrot.lane.b32.xlu0 %v971, 64
    %v974 = vpop.permute.xlu0 %973
    %v976 = vmul.f32 %v959, %v974
    %v977 = vpack.c.bf16 %v976, %v976
    %v978 = vld [vmem:[#allocation2 + $0x2a0] sm:$0xff]
    %v979 = vld [vmem:[#allocation2 + $0x2b0] sm:$0xff]
    %v980 = vld [vmem:[#allocation2 + $0x2c0] sm:$0xff]
    %v981 = vld [vmem:[#allocation2 + $0x2d0] sm:$0xff]
    %v982 = vpack.c.bf16 %v979, %v978
    %v983 = vpack.c.bf16 %v981, %v980
    %v984 = vld [vmem:[#allocation2 + $0x304] ss:$0 sm:$0xff]
    %986 = vrot.lane.b32.xlu0 %v977, 32
    %v987 = vpop.permute.xlu0 %986
    %v989 = vsel %vm196, %v987, 0
    %991 = vmatpush.bf16.msra.mxu0 0
    %992 = vmatpush.bf16.msra.mxu0 0
    %993 = vmatpush.bf16.msra.mxu0 0
    %994 = vmatpush.bf16.msra.mxu0 0
    %995 = vmatpush.bf16.msra.mxu0 0
    %996 = vmatpush.bf16.msra.mxu0 0
    %997 = vmatpush.bf16.msra.mxu0 %v983
    %998 = vmatpush.bf16.msra.mxu0 %v982
    %999 = vmatmul.bf16.gmra.mxu0 %v989
    %v1000 = vpop.f32.mrf.mxu0
    %v1001 = vadd.f32 %v984, %v1000
    %v1002 = vpop.f32.mrf.mxu0
    %1003 = vdwg.mxu0
    %v1004 = vmax.f32 %v1001, 0.0
    %v1005 = vpack.c.bf16 %v1004, %v1004
    %v1006 = vld [vmem:[#allocation2 + $0x2e0] sm:$0xff]
    %v1007 = vld [vmem:[#allocation2 + $0x2f0] sm:$0xff]
    %v1008 = vpack.c.bf16 %v1007, %v1006
    %v1009 = vld [vmem:[#allocation2 + $0x305] ss:$0 sm:$0xff]
    %v1011 = vsel %vm74, %v1005, 0
    %1013 = vmatpush.bf16.msra.mxu0 0
    %1014 = vmatpush.bf16.msra.mxu0 0
    %1015 = vmatpush.bf16.msra.mxu0 0
    %1016 = vmatpush.bf16.msra.mxu0 0
    %1017 = vmatpush.bf16.msra.mxu0 0
    %1018 = vmatpush.bf16.msra.mxu0 0
    %1019 = vmatpush.bf16.msra.mxu0 0
    %1020 = vmatpush.bf16.msra.mxu0 %v1008
    %1021 = vmatmul.bf16.gmra.mxu0 %v1011
    %v1022 = vpop.f32.mrf.mxu0
    %v1023 = vadd.f32 %v1009, %v1022
    %v1024 = vpop.f32.mrf.mxu0
    %1025 = vdwg.mxu0
    %vm1026 = vcmask 31744
    %1027 = vst.msk [vmem:[%s2] sm:$0xff] %vm1026, %v1023
    // Predicated region
    $region14: #{masif_wp_forward.1} parent=1 // pred_check
      _
    $region15: #{masif_wp_forward.1} parent=1 // pred_check_branch
      %1029 = sbr.rel (0) target = $region17
    $region16: #{masif_wp_forward.1} parent=1 // pred_region
      _
    $region17: #{masif_wp_forward.1} parent=1 // pred_fallthru
      _
    // Predicated region
    $region18: #{masif_wp_forward.1} parent=1 // pred_check
      _
    $region19: #{masif_wp_forward.1} parent=1 // pred_check_branch
      %1031 = sbr.rel (0) target = $region21
    $region20: #{masif_wp_forward.1} parent=1 // pred_region
      _
    $region21: #{masif_wp_forward.1} parent=1 // pred_fallthru
      _
    %1032 = vsyncpa [#allocation3], 1

</llo_original>
